<compile_context>
chip_gen: v6e
topology: v6e:2x2x1
jax: 0.10.0
libtpu: 0.0.40
codegen_flags: <defaults>
</compile_context>

<pallas_src>
import functools

import jax
import jax.numpy as jnp
from jax.experimental import pallas as pl
from jax.experimental.pallas import tpu as pltpu

_EMB = 64           # embedding width (Conv2d(wsi_size, 64, 1))
_ATT = 32           # attention hidden width
_NUM_CORES = 2      # leading "parallel" grid axis -> both TensorCores on v7x
_SLAB_ROWS = 72     # multiple of 8
_SLAB_LANES = 128   # lane-dense parameter slab
_NEG = -1e30        # Python float -> jaxpr literal (NOT a captured jax.Array)


def _round_up(v, m):
    return ((v + m - 1) // m) * m


def _pack_attention_params(p):
    """Pack the small in-kernel params into one lane-dense f32 slab.

    rows 0:64, lanes 0:32 -> w_a1 [64,32]
    rows 0:32, lane  32   -> w_a2 [32,1] (column -> MXU dot for the score)
    row  64,   lanes 0:64 -> b_emb [64]
    row  65,   lanes 0:32 -> b_a1 [32]
    row  66,   lane   0   -> b_a2 scalar
    """
    slab = jnp.zeros((_SLAB_ROWS, _SLAB_LANES), jnp.float32)
    slab = slab.at[0:_EMB, 0:_ATT].set(p["w_a1"].astype(jnp.float32))
    slab = slab.at[0:_ATT, _ATT:_ATT + 1].set(p["w_a2"].astype(jnp.float32))
    slab = slab.at[_EMB, 0:_EMB].set(p["b_emb"].reshape(_EMB).astype(jnp.float32))
    slab = slab.at[_EMB + 1, 0:_ATT].set(p["b_a1"].reshape(_ATT).astype(jnp.float32))
    slab = slab.at[_EMB + 2, 0].set(p["b_a2"].reshape(()).astype(jnp.float32))
    return slab


def _make_kernel(n_instances, tile, tiles_per_core):
    def kernel(x_ref, w_emb_ref, slab_ref, m_ref, l_ref, acc_ref):
        c = pl.program_id(0)   # core-parallel axis
        i = pl.program_id(1)   # sequential instance-tile axis

        # ---- init the per-core online-softmax state (resident output) -------
        @pl.when(i == 0)
        def _init():
            m_ref[0] = jnp.full_like(m_ref[0], _NEG)
            l_ref[0] = jnp.zeros_like(l_ref[0])
            acc_ref[0] = jnp.zeros_like(acc_ref[0])

        # ---- embedding_net: 1x1 conv == per-instance Linear(D->64) + ReLU ---
        b_emb = slab_ref[_EMB:_EMB + 1, 0:_EMB]                       # [1,64]
        h = jnp.dot(x_ref[...], w_emb_ref[...],
                    preferred_element_type=jnp.float32) + b_emb       # [T,64]
        h = jnp.maximum(h, 0.0)

        # Mask rows past N *after* the matmul (padded / duplicated tile data can
        # be arbitrary, including NaN/Inf; `where` scrubs those rows entirely).
        row = ((c * tiles_per_core + i) * tile
               + jax.lax.broadcasted_iota(jnp.int32, (tile, 1), 0))
        valid = row < n_instances                                     # [T,1]
        h = jnp.where(valid, h, 0.0)

        # ---- attention score: Linear(64,32) -> tanh -> Linear(32,1) ---------
        w_a1 = slab_ref[0:_EMB, 0:_ATT]                               # [64,32]
        b_a1 = slab_ref[_EMB + 1:_EMB + 2, 0:_ATT]                    # [1,32]
        w_a2 = slab_ref[0:_ATT, _ATT:_ATT + 1]                        # [32,1]
        b_a2 = slab_ref[_EMB + 2:_EMB + 3, 0:1]                       # [1,1]
        a_hid = jnp.tanh(
            jnp.dot(h, w_a1, preferred_element_type=jnp.float32) + b_a1)
        s = jnp.dot(a_hid, w_a2, preferred_element_type=jnp.float32) + b_a2
        s = jnp.where(valid, s, _NEG)                                 # [T,1]

        # ---- online softmax + attention-weighted pooling ---------------------
        m_prev = m_ref[0]                                             # [1,1]
        m_new = jnp.maximum(m_prev, jnp.max(s, axis=0, keepdims=True))
        corr = jnp.exp(m_prev - m_new)
        e = jnp.exp(s - m_new)                                        # [T,1]
        # weighted pooling as an MXU dot contracting over T: e^T @ h -> [1,64]
        part = jax.lax.dot_general(e, h, (((0,), (0,)), ((), ())),
                                   preferred_element_type=jnp.float32)
        l_ref[0] = corr * l_ref[0] + jnp.sum(e, axis=0, keepdims=True)
        acc_ref[0] = corr * acc_ref[0] + part
        m_ref[0] = m_new

    return kernel


def _pooled_partial_state(x, w_emb, slab, *, tile_n):
    """Stream instances through the kernel; return per-core (m, l, acc)."""
    n, d = x.shape

    # VMEM-aware tile: double-buffered x tile <= ~20 MB, multiple of 16 rows.
    cap = max(16, (20 * 1024 * 1024) // (2 * d * 4))
    tile = min(tile_n, cap, _round_up(n, 16))
    tile = max(16, (tile // 16) * 16)
    num_tiles = pl.cdiv(n, tile)
    tiles_per_core = pl.cdiv(num_tiles, _NUM_CORES)

    if _NUM_CORES * tiles_per_core == num_tiles:
        x_map = lambda c, i: (c * tiles_per_core + i, 0)
    else:
        # Clamp: a core whose logical tile is past the end re-reads the final
        # block; all of its rows are masked out inside the kernel.
        x_map = lambda c, i: (jnp.minimum(c * tiles_per_core + i, num_tiles - 1), 0)

    kernel = _make_kernel(n, tile, tiles_per_core)

    itemsize = jnp.dtype(x.dtype).itemsize
    flops = int(2 * n * d * _EMB + 2 * n * _EMB * _ATT + 2 * n * _ATT
                + 2 * n * _EMB + 8 * n)
    transcendentals = int(n * _ATT + n)
    bytes_accessed = int(n * d * itemsize + d * _EMB * 4 + slab.size * 4
                         + _NUM_CORES * (2 + _EMB) * 4)

    return pl.pallas_call(
        kernel,
        out_shape=(
            jax.ShapeDtypeStruct((_NUM_CORES, 1, 1), jnp.float32),     # run max
            jax.ShapeDtypeStruct((_NUM_CORES, 1, 1), jnp.float32),     # denom
            jax.ShapeDtypeStruct((_NUM_CORES, 1, _EMB), jnp.float32),  # sum e*h
        ),
        grid=(_NUM_CORES, tiles_per_core),
        in_specs=[
            pl.BlockSpec((tile, d), x_map),                    # streamed x
            pl.BlockSpec((d, _EMB), lambda c, i: (0, 0)),      # resident w_emb
            pl.BlockSpec((_SLAB_ROWS, _SLAB_LANES), lambda c, i: (0, 0)),
        ],
        out_specs=(
            pl.BlockSpec((1, 1, 1), lambda c, i: (c, 0, 0)),
            pl.BlockSpec((1, 1, 1), lambda c, i: (c, 0, 0)),
            pl.BlockSpec((1, 1, _EMB), lambda c, i: (c, 0, 0)),
        ),
        compiler_params=pltpu.CompilerParams(
            dimension_semantics=("parallel", "arbitrary"),
            vmem_limit_bytes=32 * 1024 * 1024,
        ),
        cost_estimate=pl.CostEstimate(
            flops=flops, transcendentals=transcendentals,
            bytes_accessed=bytes_accessed),
    )(x, w_emb, slab)


@functools.partial(jax.jit, static_argnames=("tile_n",))
def deep_attn_mil_forward(x, params, *, tile_n=4096):
    """x: [N, wsi_size]; params: dict of pre-transposed weights."""
    hp = jax.lax.Precision.HIGHEST
    w_emb = params["w_emb"].astype(jnp.float32)
    slab = _pack_attention_params(params)

    m_p, l_p, acc_p = _pooled_partial_state(x, w_emb, slab, tile_n=tile_n)

    # ---- merge per-core online-softmax partial states (tiny, plain JAX) -----
    m = m_p[:, 0, 0]                                   # [2]
    l = l_p[:, 0, 0]                                   # [2]
    acc = acc_p[:, 0, :]                               # [2, 64]
    m_glob = jnp.max(m)
    scale = jnp.exp(m - m_glob)                        # [2]
    denom = jnp.sum(scale * l)
    pooled = (jnp.sum(scale[:, None] * acc, axis=0) / denom)[None, :]   # [1,64]

    # ---- fc6: Linear(64,32) -> ReLU -> Dropout(eval identity) -> Linear ----
    z = jnp.maximum(jnp.dot(pooled, params["w_f1"], precision=hp)
                    + params["b_f1"], 0.0)
    # TODO(synk): Dropout(p=0.5) is identity in eval-mode forward.
    y_prob = jnp.dot(z, params["w_f2"], precision=hp) + params["b_f2"]
    hazards = jax.nn.sigmoid(y_prob)
    y_hat = jnp.argmax(hazards)
    return y_prob, hazards, y_hat


def init_params(key, wsi_size=128, emb=64, att=32, n_classes=2):
    """Deterministic synthetic params, stored pre-transposed (in, out)."""
    keys = jax.random.split(key, 10)
    s = 0.05
    return {
        # Conv2d(wsi_size, 64, 1) weight [64, wsi, 1, 1] -> [wsi, 64]
        "w_emb": s * jax.random.normal(keys[0], (wsi_size, emb), jnp.float32),
        "b_emb": s * jax.random.normal(keys[1], (1, emb), jnp.float32),
        # attention Linear(64, 32)
        "w_a1": s * jax.random.normal(keys[2], (emb, att), jnp.float32),
        "b_a1": s * jax.random.normal(keys[3], (1, att), jnp.float32),
        # attention Linear(32, 1) -> stored as a [32, 1] column
        "w_a2": s * jax.random.normal(keys[4], (att, 1), jnp.float32),
        "b_a2": s * jax.random.normal(keys[5], (1, 1), jnp.float32),
        # fc6 Linear(64, 32)
        "w_f1": s * jax.random.normal(keys[6], (emb, att), jnp.float32),
        "b_f1": s * jax.random.normal(keys[7], (1, att), jnp.float32),
        # fc6 Linear(32, n_classes)
        "w_f2": s * jax.random.normal(keys[8], (att, n_classes), jnp.float32),
        "b_f2": s * jax.random.normal(keys[9], (1, n_classes), jnp.float32),
    }


def reference_forward(x, p):
    """Pure-JAX f32 reference of the PyTorch forward."""
    hp = jax.lax.Precision.HIGHEST
    h = jnp.maximum(jnp.dot(x, p["w_emb"], precision=hp) + p["b_emb"], 0.0)
    a_hid = jnp.tanh(jnp.dot(h, p["w_a1"], precision=hp) + p["b_a1"])
    s = (jnp.dot(a_hid, p["w_a2"], precision=hp) + p["b_a2"])[:, 0]     # [N]
    a = jax.nn.softmax(s)[None, :]                                      # [1,N]
    m = jnp.dot(a, h, precision=hp)                                     # [1,64]
    z = jnp.maximum(jnp.dot(m, p["w_f1"], precision=hp) + p["b_f1"], 0.0)
    y_prob = jnp.dot(z, p["w_f2"], precision=hp) + p["b_f2"]
    hazards = jax.nn.sigmoid(y_prob)
    y_hat = jnp.argmax(hazards)
    return y_prob, hazards, y_hat


if __name__ == "__main__":
    key = jax.random.PRNGKey(0)
    k_x, k_p = jax.random.split(key)

    N = 200          # bag size (not a multiple of any tile -> exercises masking)
    WSI = 128        # wsi_size kept small (PyTorch default is 512)
    N_CLASSES = 2

    x = jax.random.normal(k_x, (N, WSI), jnp.float32)
    params = init_params(k_p, wsi_size=WSI, emb=64, att=32, n_classes=N_CLASSES)

    r_prob, r_haz, r_hat = reference_forward(x, params)

    # Production path: large default tile (single tile per core at this N).
    y_prob, hazards, y_hat = deep_attn_mil_forward(x, params, tile_n=4096)
    jax.block_until_ready((y_prob, hazards, y_hat))
    assert jnp.allclose(y_prob, r_prob, atol=2e-3, rtol=2e-3)
    assert jnp.allclose(hazards, r_haz, atol=2e-3, rtol=2e-3)
    assert int(y_hat) == int(r_hat)

    # Small-tile path: exercises multi-tile streaming, the masked partial last
    # tile and the cross-core online-softmax merge.
    y_prob2, hazards2, y_hat2 = deep_attn_mil_forward(x, params, tile_n=64)
    jax.block_until_ready((y_prob2, hazards2, y_hat2))
    assert jnp.allclose(y_prob2, r_prob, atol=2e-3, rtol=2e-3)
    assert jnp.allclose(hazards2, r_haz, atol=2e-3, rtol=2e-3)
    assert int(y_hat2) == int(r_hat)

    print("KERNEL_OK")
</pallas_src>

<mosaic_0001>
module attributes {stable_mosaic.version = 11 : i64} {
  func.func @kernel(%arg0: i32, %arg1: i32, %arg2: memref<208x128xf32, #tpu.memory_space<vmem>>, %arg3: memref<128x64xf32, #tpu.memory_space<vmem>>, %arg4: memref<72x128xf32, #tpu.memory_space<vmem>>, %arg5: memref<1x1x1xf32, #tpu.memory_space<vmem>>, %arg6: memref<1x1x1xf32, #tpu.memory_space<vmem>>, %arg7: memref<1x1x64xf32, #tpu.memory_space<vmem>>) attributes {dimension_semantics = [#tpu.dimension_semantics<parallel>, #tpu.dimension_semantics<arbitrary>], iteration_bounds = array<i64: 2, 1>, scalar_prefetch = 0 : i64, scratch_operands = 0 : i64, tpu.core_type = #tpu.core_type<tc>, window_params = [{transform_indices = @transform_0, window_bounds = array<i64: 208, 128>}, {pipeline_mode = #tpu.pipeline_mode<synchronous>, transform_indices = @transform_1, window_bounds = array<i64: 128, 64>}, {pipeline_mode = #tpu.pipeline_mode<synchronous>, transform_indices = @transform_2, window_bounds = array<i64: 72, 128>}, {transform_indices = @transform_3, window_bounds = array<i64: 1, 1, 1>}, {transform_indices = @transform_4, window_bounds = array<i64: 1, 1, 1>}, {transform_indices = @transform_5, window_bounds = array<i64: 1, 1, 64>}]} {
    %c0_i32 = arith.constant 0 : i32
    %0 = arith.cmpi eq, %arg1, %c0_i32 : i32
    %1 = arith.extui %0 : i1 to i32
    %c0_i32_0 = arith.constant 0 : i32
    %2 = arith.cmpi ne, %1, %c0_i32_0 : i32
    scf.if %2 {
      %cst_36 = arith.constant -1.000000e+30 : f32
      %67 = vector.broadcast %cst_36 : f32 to vector<1x1xf32>
      %c0_37 = arith.constant 0 : index
      %c0_38 = arith.constant 0 : index
      %c0_39 = arith.constant 0 : index
      %68 = vector.load %arg5[%c0_37, %c0_38, %c0_39] : memref<1x1x1xf32, #tpu.memory_space<vmem>>, vector<1x1x1xf32>
      %69 = vector.shape_cast %68 : vector<1x1x1xf32> to vector<1x1xf32>
      %70 = vector.shape_cast %67 : vector<1x1xf32> to vector<1x1x1xf32>
      tpu.vector_store %arg5[%c0_37, %c0_38, %c0_39], %70 {strides = array<i32>} : memref<1x1x1xf32, #tpu.memory_space<vmem>>, vector<1x1x1xf32>,
      %cst_40 = arith.constant 0.000000e+00 : f32
      %71 = vector.broadcast %cst_40 : f32 to vector<1x1xf32>
      %c0_41 = arith.constant 0 : index
      %c0_42 = arith.constant 0 : index
      %c0_43 = arith.constant 0 : index
      %72 = vector.load %arg6[%c0_41, %c0_42, %c0_43] : memref<1x1x1xf32, #tpu.memory_space<vmem>>, vector<1x1x1xf32>
      %73 = vector.shape_cast %72 : vector<1x1x1xf32> to vector<1x1xf32>
      %74 = vector.shape_cast %71 : vector<1x1xf32> to vector<1x1x1xf32>
      tpu.vector_store %arg6[%c0_41, %c0_42, %c0_43], %74 {strides = array<i32>} : memref<1x1x1xf32, #tpu.memory_space<vmem>>, vector<1x1x1xf32>,
      %cst_44 = arith.constant 0.000000e+00 : f32
      %75 = vector.broadcast %cst_44 : f32 to vector<1x64xf32>
      %c0_45 = arith.constant 0 : index
      %c0_46 = arith.constant 0 : index
      %c0_47 = arith.constant 0 : index
      %76 = vector.load %arg7[%c0_45, %c0_46, %c0_47] : memref<1x1x64xf32, #tpu.memory_space<vmem>>, vector<1x1x64xf32>
      %77 = vector.shape_cast %76 : vector<1x1x64xf32> to vector<1x64xf32>
      %78 = vector.shape_cast %75 : vector<1x64xf32> to vector<1x1x64xf32>
      tpu.vector_store %arg7[%c0_45, %c0_46, %c0_47], %78 {strides = array<i32>} : memref<1x1x64xf32, #tpu.memory_space<vmem>>, vector<1x1x64xf32>,
    } else {
    }
    %c64 = arith.constant 64 : index
    %c0 = arith.constant 0 : index
    %3 = vector.load %arg4[%c64, %c0] : memref<72x128xf32, #tpu.memory_space<vmem>>, vector<1x64xf32>
    %c0_1 = arith.constant 0 : index
    %c0_2 = arith.constant 0 : index
    %4 = vector.load %arg2[%c0_1, %c0_2] : memref<208x128xf32, #tpu.memory_space<vmem>>, vector<208x128xf32>
    %c0_3 = arith.constant 0 : index
    %c0_4 = arith.constant 0 : index
    %5 = vector.load %arg3[%c0_3, %c0_4] : memref<128x64xf32, #tpu.memory_space<vmem>>, vector<128x64xf32>
    %cst = arith.constant dense<0.000000e+00> : vector<208x64xf32>
    %6 = tpu.matmul %4, %5, %cst {dimension_numbers = #tpu.dot_dimension_numbers<[1], [0], [0], [1], [0, 0, 1, 1], [], []>} : vector<208x128xf32>, vector<128x64xf32>, vector<208x64xf32> -> vector<208x64xf32>
    %7 = vector.broadcast %3 : vector<1x64xf32> to vector<208x64xf32>
    %8 = arith.addf %6, %7 : vector<208x64xf32>
    %cst_5 = arith.constant 0.000000e+00 : f32
    %9 = vector.broadcast %cst_5 : f32 to vector<208x64xf32>
    %10 = arith.maximumf %8, %9 : vector<208x64xf32>
    %c1_i32 = arith.constant 1 : i32
    %11 = arith.muli %arg0, %c1_i32 : i32
    %12 = arith.addi %11, %arg1 : i32
    %c208_i32 = arith.constant 208 : i32
    %13 = arith.muli %12, %c208_i32 : i32
    %14 = tpu.iota {dimensions = array<i32: 0>} : vector<208x1xi32>
    %15 = vector.broadcast %13 : i32 to vector<208x1xi32>
    %16 = arith.addi %15, %14 : vector<208x1xi32>
    %c200_i32 = arith.constant 200 : i32
    %17 = vector.broadcast %c200_i32 : i32 to vector<208x1xi32>
    %18 = arith.cmpi slt, %16, %17 : vector<208x1xi32>
    %cst_6 = arith.constant 0.000000e+00 : f32
    %19 = vector.shape_cast %18 : vector<208x1xi1> to vector<208x1xi1>
    %20 = vector.broadcast %19 : vector<208x1xi1> to vector<208x64xi1>
    %21 = vector.broadcast %cst_6 : f32 to vector<208x64xf32>
    %22 = arith.select %20, %10, %21 : vector<208x64xi1>, vector<208x64xf32>
    %c0_7 = arith.constant 0 : index
    %c0_8 = arith.constant 0 : index
    %23 = vector.load %arg4[%c0_7, %c0_8] : memref<72x128xf32, #tpu.memory_space<vmem>>, vector<64x32xf32>
    %c65 = arith.constant 65 : index
    %c0_9 = arith.constant 0 : index
    %24 = vector.load %arg4[%c65, %c0_9] : memref<72x128xf32, #tpu.memory_space<vmem>>, vector<1x32xf32>
    %c0_10 = arith.constant 0 : index
    %c32 = arith.constant 32 : index
    %25 = vector.load %arg4[%c0_10, %c32] : memref<72x128xf32, #tpu.memory_space<vmem>>, vector<32x1xf32>
    %c66 = arith.constant 66 : index
    %c0_11 = arith.constant 0 : index
    %26 = vector.load %arg4[%c66, %c0_11] : memref<72x128xf32, #tpu.memory_space<vmem>>, vector<1x1xf32>
    %cst_12 = arith.constant dense<0.000000e+00> : vector<208x32xf32>
    %27 = tpu.matmul %22, %23, %cst_12 {dimension_numbers = #tpu.dot_dimension_numbers<[1], [0], [0], [1], [0, 0, 1, 1], [], []>} : vector<208x64xf32>, vector<64x32xf32>, vector<208x32xf32> -> vector<208x32xf32>
    %28 = vector.broadcast %24 : vector<1x32xf32> to vector<208x32xf32>
    %29 = arith.addf %27, %28 : vector<208x32xf32>
    %30 = math.tanh %29 : vector<208x32xf32>
    %cst_13 = arith.constant dense<0.000000e+00> : vector<208x1xf32>
    %31 = tpu.matmul %30, %25, %cst_13 {dimension_numbers = #tpu.dot_dimension_numbers<[1], [0], [0], [1], [0, 0, 1, 1], [], []>} : vector<208x32xf32>, vector<32x1xf32>, vector<208x1xf32> -> vector<208x1xf32>
    %32 = vector.broadcast %26 : vector<1x1xf32> to vector<208x1xf32>
    %33 = arith.addf %31, %32 : vector<208x1xf32>
    %cst_14 = arith.constant -1.000000e+30 : f32
    %34 = vector.broadcast %cst_14 : f32 to vector<208x1xf32>
    %35 = arith.select %18, %33, %34 : vector<208x1xi1>, vector<208x1xf32>
    %c0_15 = arith.constant 0 : index
    %c0_16 = arith.constant 0 : index
    %c0_17 = arith.constant 0 : index
    %36 = vector.load %arg5[%c0_15, %c0_16, %c0_17] : memref<1x1x1xf32, #tpu.memory_space<vmem>>, vector<1x1x1xf32>
    %37 = vector.shape_cast %36 : vector<1x1x1xf32> to vector<1x1xf32>
    %cst_18 = arith.constant dense<0xFF800000> : vector<1xf32>
    %38 = vector.multi_reduction <maximumf>, %35, %cst_18 [0] : vector<208x1xf32> to vector<1xf32>
    %39 = vector.shape_cast %38 : vector<1xf32> to vector<1x1xf32>
    %40 = arith.maximumf %37, %39 : vector<1x1xf32>
    %41 = arith.subf %37, %40 : vector<1x1xf32>
    %42 = math.exp %41 : vector<1x1xf32>
    %43 = vector.broadcast %40 : vector<1x1xf32> to vector<208x1xf32>
    %44 = arith.subf %35, %43 : vector<208x1xf32>
    %45 = math.exp %44 : vector<208x1xf32>
    %cst_19 = arith.constant dense<0.000000e+00> : vector<1x64xf32>
    %46 = tpu.matmul %45, %22, %cst_19 {dimension_numbers = #tpu.dot_dimension_numbers<[0], [0], [1], [1], [0, 1, 1, 1], [], []>} : vector<208x1xf32>, vector<208x64xf32>, vector<1x64xf32> -> vector<1x64xf32>
    %c0_20 = arith.constant 0 : index
    %c0_21 = arith.constant 0 : index
    %c0_22 = arith.constant 0 : index
    %47 = vector.load %arg6[%c0_20, %c0_21, %c0_22] : memref<1x1x1xf32, #tpu.memory_space<vmem>>, vector<1x1x1xf32>
    %48 = vector.shape_cast %47 : vector<1x1x1xf32> to vector<1x1xf32>
    %49 = arith.mulf %42, %48 : vector<1x1xf32>
    %cst_23 = arith.constant dense<0.000000e+00> : vector<1xf32>
    %50 = vector.multi_reduction <add>, %45, %cst_23 [0] : vector<208x1xf32> to vector<1xf32>
    %51 = vector.shape_cast %50 : vector<1xf32> to vector<1x1xf32>
    %52 = arith.addf %49, %51 : vector<1x1xf32>
    %c0_24 = arith.constant 0 : index
    %c0_25 = arith.constant 0 : index
    %c0_26 = arith.constant 0 : index
    %53 = vector.load %arg6[%c0_24, %c0_25, %c0_26] : memref<1x1x1xf32, #tpu.memory_space<vmem>>, vector<1x1x1xf32>
    %54 = vector.shape_cast %53 : vector<1x1x1xf32> to vector<1x1xf32>
    %55 = vector.shape_cast %52 : vector<1x1xf32> to vector<1x1x1xf32>
    tpu.vector_store %arg6[%c0_24, %c0_25, %c0_26], %55 {strides = array<i32>} : memref<1x1x1xf32, #tpu.memory_space<vmem>>, vector<1x1x1xf32>,
    %c0_27 = arith.constant 0 : index
    %c0_28 = arith.constant 0 : index
    %c0_29 = arith.constant 0 : index
    %56 = vector.load %arg7[%c0_27, %c0_28, %c0_29] : memref<1x1x64xf32, #tpu.memory_space<vmem>>, vector<1x1x64xf32>
    %57 = vector.shape_cast %56 : vector<1x1x64xf32> to vector<1x64xf32>
    %58 = vector.broadcast %42 : vector<1x1xf32> to vector<1x64xf32>
    %59 = arith.mulf %58, %57 : vector<1x64xf32>
    %60 = arith.addf %59, %46 : vector<1x64xf32>
    %c0_30 = arith.constant 0 : index
    %c0_31 = arith.constant 0 : index
    %c0_32 = arith.constant 0 : index
    %61 = vector.load %arg7[%c0_30, %c0_31, %c0_32] : memref<1x1x64xf32, #tpu.memory_space<vmem>>, vector<1x1x64xf32>
    %62 = vector.shape_cast %61 : vector<1x1x64xf32> to vector<1x64xf32>
    %63 = vector.shape_cast %60 : vector<1x64xf32> to vector<1x1x64xf32>
    tpu.vector_store %arg7[%c0_30, %c0_31, %c0_32], %63 {strides = array<i32>} : memref<1x1x64xf32, #tpu.memory_space<vmem>>, vector<1x1x64xf32>,
    %c0_33 = arith.constant 0 : index
    %c0_34 = arith.constant 0 : index
    %c0_35 = arith.constant 0 : index
    %64 = vector.load %arg5[%c0_33, %c0_34, %c0_35] : memref<1x1x1xf32, #tpu.memory_space<vmem>>, vector<1x1x1xf32>
    %65 = vector.shape_cast %64 : vector<1x1x1xf32> to vector<1x1xf32>
    %66 = vector.shape_cast %40 : vector<1x1xf32> to vector<1x1x1xf32>
    tpu.vector_store %arg5[%c0_33, %c0_34, %c0_35], %66 {strides = array<i32>} : memref<1x1x1xf32, #tpu.memory_space<vmem>>, vector<1x1x1xf32>,
    return
  }
  func.func @transform_0(%arg0: i32, %arg1: i32) -> (i32, i32) {
    %c1_i32 = arith.constant 1 : i32
    %0 = arith.muli %arg0, %c1_i32 : i32
    %1 = arith.addi %0, %arg1 : i32
    %c0_i32 = arith.constant 0 : i32
    %2 = arith.minsi %1, %c0_i32 : i32
    %c0_i32_0 = arith.constant 0 : i32
    %c0_i32_1 = arith.constant 0 : i32
    return %2, %c0_i32_0 : i32, i32
  }
  func.func @transform_1(%arg0: i32, %arg1: i32) -> (i32, i32) {
    %c0_i32 = arith.constant 0 : i32
    %c0_i32_0 = arith.constant 0 : i32
    %c0_i32_1 = arith.constant 0 : i32
    return %c0_i32, %c0_i32_0 : i32, i32
  }
  func.func @transform_2(%arg0: i32, %arg1: i32) -> (i32, i32) {
    %c0_i32 = arith.constant 0 : i32
    %c0_i32_0 = arith.constant 0 : i32
    %c0_i32_1 = arith.constant 0 : i32
    return %c0_i32, %c0_i32_0 : i32, i32
  }
  func.func @transform_3(%arg0: i32, %arg1: i32) -> (i32, i32, i32) {
    %c0_i32 = arith.constant 0 : i32
    %c0_i32_0 = arith.constant 0 : i32
    %c0_i32_1 = arith.constant 0 : i32
    return %arg0, %c0_i32, %c0_i32_0 : i32, i32, i32
  }
  func.func @transform_4(%arg0: i32, %arg1: i32) -> (i32, i32, i32) {
    %c0_i32 = arith.constant 0 : i32
    %c0_i32_0 = arith.constant 0 : i32
    %c0_i32_1 = arith.constant 0 : i32
    return %arg0, %c0_i32, %c0_i32_0 : i32, i32, i32
  }
  func.func @transform_5(%arg0: i32, %arg1: i32) -> (i32, i32, i32) {
    %c0_i32 = arith.constant 0 : i32
    %c0_i32_0 = arith.constant 0 : i32
    %c0_i32_1 = arith.constant 0 : i32
    return %arg0, %c0_i32, %c0_i32_0 : i32, i32, i32
  }
}

</mosaic_0001>

<llo_original>
// kernel: deep_attn_mil_forward.1
$region0: #{deep_attn_mil_forward.1}
  #allocation0 [shape = 'u32[]', space=smem, size = 0x4, offset = 0x4, fixed_abs, tag = 'smem constant byte address 0x4 - core index']
  #allocation1 [shape = 'u32[144,128]{1,0:T(1,128)}', space=vmem, size = 0x12000, scoped, tag = 'internal scratch']
  %s0 = inlined_call_operand.vmem [shape: f32[200,128], index: 0, kind: input, shape index: {}]
  %s1 = inlined_call_operand.vmem [shape: f32[128,64], index: 1, kind: input, shape index: {}]
  %s2 = inlined_call_operand.vmem [shape: f32[72,128], index: 2, kind: input, shape index: {}]
  %s3 = inlined_call_operand.vmem [shape: f32[2,1,1], index: 3, kind: output, shape index: {0}]
  %s4 = inlined_call_operand.vmem [shape: f32[2,1,1], index: 4, kind: output, shape index: {1}]
  %s5 = inlined_call_operand.vmem [shape: f32[2,1,64], index: 5, kind: output, shape index: {2}]
  %6 = xla_tuple %s3, %s4, %s5
  %s7 = sld [smem:[#allocation0]]
  $region65: #{deep_attn_mil_forward.1} parent=0
    _
  %s9 = ssub.s32 1, %s7
  %s10 = scalar_select 0, %s9, %s7
  loop: start=0, step=1, limit=4
  $region2: #{deep_attn_mil_forward.1} parent=0 // loop_pre_header
    _
  $region3: #{deep_attn_mil_forward.1} parent=0 // loop_header
    %s12 = sphi 0, %s16
    %p13 = scmp.ge.s32.totalorder %s12, 4
    %s19 = sphi 0, %s31
    %s20 = sphi 0, %s27
    %s21 = sphi 0, %s19
    %s22 = sphi 0, %s20
    %s23 = sphi 0, %s21
    %s24 = sphi 0, %s22
    %s40 = sphi 0, %s42
    %s43 = sphi 0, %s40
    %s44 = sphi 0, %s43
    %s60 = sphi 0, %s44
    %s64 = sphi 0, %s64
    %s66 = sphi 0, %s64
    %s67 = sphi 0, %s66
    %s81 = sphi 0, %s67
    %s85 = sphi 0, %s85
    %s87 = sphi 0, %s85
    %s88 = sphi 0, %s87
    %s102 = sphi 0, %s88
    %s108 = sphi 0, %s110
    %s111 = sphi 0, %s108
    %s112 = sphi 0, %s111
    %s128 = sphi 0, %s112
    %s134 = sphi 0, %s136
    %s137 = sphi 0, %s134
    %s138 = sphi 0, %s137
    %s154 = sphi 0, %s138
    %s160 = sphi 0, %s162
    %s163 = sphi 0, %s160
    %s164 = sphi 0, %s163
    %s180 = sphi 0, %s164
  $region4: #{deep_attn_mil_forward.1} parent=0 // loop_header_branch
    %15 = sbr.rel (%p13) target = $region8
  $region5: #{deep_attn_mil_forward.1} parent=0 // loop_body
    %s17 = ssub.s32 %s12, 1
    %s18 = ssub.s32 %s12, 2
    %s25 = sadd.s32 1, %s20
    %p26 = scmp.ge.s32.totalorder %s25, 1
    %s27 = scalar_select %p26, 0, %s25
    %s28 = sadd.s32 1, %s19
    %s29 = scalar_select %p26, %s28, %s19
    %p30 = scmp.ge.s32.totalorder %s29, 2
    %s31 = scalar_select %p30, 0, %s29
    %s32 = sadd.s32 %s19, %s20
    %p33 = scmp.lt.s32.totalorder %s32, 0
    %s34 = scalar_select %p33, %s32, 0
    %s35 = sadd.s32 %s31, %s27
    %p36 = scmp.lt.s32.totalorder %s35, 0
    %s37 = scalar_select %p36, %s35, 0
    %s38 = ssub.s32 %s34, %s37
    %p39 = scmp.eq.s32.totalorder %s38, 0
    %s41 = sadd.s32 %s40, 1
    %s42 = scalar_select %p39, %s40, %s41
    %p45 = pneg %p39
    %p46 = scmp.eq.s32.totalorder %s12, 1
    %p47 = por %p45, %p46
    %p48 = scmp.ne.s32.totalorder %s40, %s43
    %p49 = scmp.eq.s32.totalorder %s12, 0
    %p50 = por %p48, %p49
    %p51 = scmp.ne.s32.totalorder %s40, %s43
    %p52 = scmp.eq.s32.totalorder %s17, 1
    %p53 = por %p51, %p52
    %p54 = scmp.ne.s32.totalorder %s43, %s44
    %p55 = scmp.eq.s32.totalorder %s17, 0
    %p56 = por %p54, %p55
    %p57 = scmp.ne.s32.totalorder %s43, %s44
    %p58 = scmp.eq.s32.totalorder %s18, 1
    %p59 = por %p57, %p58
    %p61 = scmp.ne.s32.totalorder %s44, %s60
    %p62 = scmp.eq.s32.totalorder %s18, 0
    %p63 = por %p61, %p62
    %s65 = sadd.s32 %s64, 1
    %p68 = scmp.eq.s32.totalorder %s12, 1
    %p69 = scmp.ne.s32.totalorder %s64, %s66
    %p70 = scmp.eq.s32.totalorder %s12, 0
    %p71 = por %p69, %p70
    %p72 = scmp.ne.s32.totalorder %s64, %s66
    %p73 = scmp.eq.s32.totalorder %s17, 1
    %p74 = por %p72, %p73
    %p75 = scmp.ne.s32.totalorder %s66, %s67
    %p76 = scmp.eq.s32.totalorder %s17, 0
    %p77 = por %p75, %p76
    %p78 = scmp.ne.s32.totalorder %s66, %s67
    %p79 = scmp.eq.s32.totalorder %s18, 1
    %p80 = por %p78, %p79
    %p82 = scmp.ne.s32.totalorder %s67, %s81
    %p83 = scmp.eq.s32.totalorder %s18, 0
    %p84 = por %p82, %p83
    %s86 = sadd.s32 %s85, 1
    %p89 = scmp.eq.s32.totalorder %s12, 1
    %p90 = scmp.ne.s32.totalorder %s85, %s87
    %p91 = scmp.eq.s32.totalorder %s12, 0
    %p92 = por %p90, %p91
    %p93 = scmp.ne.s32.totalorder %s85, %s87
    %p94 = scmp.eq.s32.totalorder %s17, 1
    %p95 = por %p93, %p94
    %p96 = scmp.ne.s32.totalorder %s87, %s88
    %p97 = scmp.eq.s32.totalorder %s17, 0
    %p98 = por %p96, %p97
    %p99 = scmp.ne.s32.totalorder %s87, %s88
    %p100 = scmp.eq.s32.totalorder %s18, 1
    %p101 = por %p99, %p100
    %p103 = scmp.ne.s32.totalorder %s88, %s102
    %p104 = scmp.eq.s32.totalorder %s18, 0
    %p105 = por %p103, %p104
    %s106 = ssub.s32 %s19, %s31
    %p107 = scmp.eq.s32.totalorder %s106, 0
    %s109 = sadd.s32 %s108, 1
    %s110 = scalar_select %p107, %s108, %s109
    %p113 = pneg %p107
    %p114 = scmp.eq.s32.totalorder %s12, 1
    %p115 = por %p113, %p114
    %p116 = scmp.ne.s32.totalorder %s108, %s111
    %p117 = scmp.eq.s32.totalorder %s12, 0
    %p118 = por %p116, %p117
    %p119 = scmp.ne.s32.totalorder %s108, %s111
    %p120 = scmp.eq.s32.totalorder %s17, 1
    %p121 = por %p119, %p120
    %p122 = scmp.ne.s32.totalorder %s111, %s112
    %p123 = scmp.eq.s32.totalorder %s17, 0
    %p124 = por %p122, %p123
    %p125 = scmp.ne.s32.totalorder %s111, %s112
    %p126 = scmp.eq.s32.totalorder %s18, 1
    %p127 = por %p125, %p126
    %p129 = scmp.ne.s32.totalorder %s112, %s128
    %p130 = scmp.eq.s32.totalorder %s18, 0
    %p131 = por %p129, %p130
    %s132 = ssub.s32 %s19, %s31
    %p133 = scmp.eq.s32.totalorder %s132, 0
    %s135 = sadd.s32 %s134, 1
    %s136 = scalar_select %p133, %s134, %s135
    %p139 = pneg %p133
    %p140 = scmp.eq.s32.totalorder %s12, 1
    %p141 = por %p139, %p140
    %p142 = scmp.ne.s32.totalorder %s134, %s137
    %p143 = scmp.eq.s32.totalorder %s12, 0
    %p144 = por %p142, %p143
    %p145 = scmp.ne.s32.totalorder %s134, %s137
    %p146 = scmp.eq.s32.totalorder %s17, 1
    %p147 = por %p145, %p146
    %p148 = scmp.ne.s32.totalorder %s137, %s138
    %p149 = scmp.eq.s32.totalorder %s17, 0
    %p150 = por %p148, %p149
    %p151 = scmp.ne.s32.totalorder %s137, %s138
    %p152 = scmp.eq.s32.totalorder %s18, 1
    %p153 = por %p151, %p152
    %p155 = scmp.ne.s32.totalorder %s138, %s154
    %p156 = scmp.eq.s32.totalorder %s18, 0
    %p157 = por %p155, %p156
    %s158 = ssub.s32 %s19, %s31
    %p159 = scmp.eq.s32.totalorder %s158, 0
    %s161 = sadd.s32 %s160, 1
    %s162 = scalar_select %p159, %s160, %s161
    %p165 = pneg %p159
    %p166 = scmp.eq.s32.totalorder %s12, 1
    %p167 = por %p165, %p166
    %p168 = scmp.ne.s32.totalorder %s160, %s163
    %p169 = scmp.eq.s32.totalorder %s12, 0
    %p170 = por %p168, %p169
    %p171 = scmp.ne.s32.totalorder %s160, %s163
    %p172 = scmp.eq.s32.totalorder %s17, 1
    %p173 = por %p171, %p172
    %p174 = scmp.ne.s32.totalorder %s163, %s164
    %p175 = scmp.eq.s32.totalorder %s17, 0
    %p176 = por %p174, %p175
    %p177 = scmp.ne.s32.totalorder %s163, %s164
    %p178 = scmp.eq.s32.totalorder %s18, 1
    %p179 = por %p177, %p178
    %p181 = scmp.ne.s32.totalorder %s164, %s180
    %p182 = scmp.eq.s32.totalorder %s18, 0
    %p183 = por %p181, %p182
    %p184 = scmp.le.s32.totalorder 1, %s12
    %p185 = scmp.lt.s32.totalorder %s12, 3
    %p186 = pnand %p184, %p185
    %p187 = pneg %p186
    // Predicated region
    $region9: #{deep_attn_mil_forward.1} parent=5 // pred_check
      _
    $region10: #{deep_attn_mil_forward.1} parent=5 // pred_check_branch
      %189 = sbr.rel (%p186) target = $region12
    $region11: #{deep_attn_mil_forward.1} parent=5 // pred_region
      %s190 = ssub.s32 %s12, 1
      // Predicated region
      $region13: #{deep_attn_mil_forward.1} parent=11 // pred_check
        %p191 = pneg %p77
      $region14: #{deep_attn_mil_forward.1} parent=11 // pred_check_branch
        %193 = sbr.rel (%p191) target = $region16
      $region15: #{deep_attn_mil_forward.1} parent=11 // pred_region
        _
      $region16: #{deep_attn_mil_forward.1} parent=11 // pred_fallthru
        _
      // Predicated region
      $region17: #{deep_attn_mil_forward.1} parent=11 // pred_check
        %p194 = pneg %p98
      $region18: #{deep_attn_mil_forward.1} parent=11 // pred_check_branch
        %196 = sbr.rel (%p194) target = $region20
      $region19: #{deep_attn_mil_forward.1} parent=11 // pred_region
        _
      $region20: #{deep_attn_mil_forward.1} parent=11 // pred_fallthru
        _
    $region12: #{deep_attn_mil_forward.1} parent=5 // pred_fallthru
      _
    %p197 = scmp.lt.s32.totalorder %s12, 2
    // Predicated region
    $region21: #{deep_attn_mil_forward.1} parent=5 // pred_check
      %p198 = pneg %p197
    $region22: #{deep_attn_mil_forward.1} parent=5 // pred_check_branch
      %200 = sbr.rel (%p198) target = $region24
    $region23: #{deep_attn_mil_forward.1} parent=5 // pred_region
      // Predicated region
      $region25: #{deep_attn_mil_forward.1} parent=23 // pred_check
        %p201 = pneg %p50
      $region26: #{deep_attn_mil_forward.1} parent=23 // pred_check_branch
        %203 = sbr.rel (%p201) target = $region28
      $region27: #{deep_attn_mil_forward.1} parent=23 // pred_region
        %s204 = sadd.s32 %s19, %s20
        %p205 = scmp.lt.s32.totalorder %s204, 0
        %s206 = scalar_select %p205, %s204, 0
        %s207 = smul.u32 26, %s206
        %s208 = ssub.s32 25, %s207
        %s209 = smul.u32 128, %s208
        %p210 = scmp.lt.s32.totalorder %s207, 24
        %s211 = scalar_select %p210, %s207, 24
        %s212 = smul.addr %s211, 8
        %s213 = scalar_lea.vmem %s0, %s212
        %s214 = sadd.s32 %s19, %s20
        %p215 = scmp.lt.s32.totalorder %s214, 0
        %s216 = scalar_select %p215, %s214, 0
        %s217 = smul.u32 26, %s216
        %s218 = ssub.s32 25, %s217
        %s219 = smul.u32 128, %s218
      $region28: #{deep_attn_mil_forward.1} parent=23 // pred_fallthru
        _
    $region24: #{deep_attn_mil_forward.1} parent=5 // pred_fallthru
      _
    %p220 = scmp.le.s32.totalorder 1, %s12
    %p221 = scmp.lt.s32.totalorder %s12, 3
    %p222 = pnand %p220, %p221
    %p223 = pneg %p222
    // Predicated region
    $region29: #{deep_attn_mil_forward.1} parent=5 // pred_check
      _
    $region30: #{deep_attn_mil_forward.1} parent=5 // pred_check_branch
      %225 = sbr.rel (%p222) target = $region32
    $region31: #{deep_attn_mil_forward.1} parent=5 // pred_region
      %s226 = ssub.s32 %s12, 1
      %s227 = sadd.s32 %s21, %s22
      %p228 = scmp.lt.s32.totalorder %s227, 0
      %s229 = scalar_select %p228, %s227, 0
      %s230 = smul.u32 26, %s229
      %s231 = ssub.s32 25, %s230
      %s232 = smul.u32 128, %s231
      %p233 = scmp.lt.s32.totalorder %s230, 24
      %s234 = scalar_select %p233, %s230, 24
      %s235 = smul.addr %s234, 8
      %s236 = scalar_lea.vmem %s0, %s235
      %p237 = pneg %p56
      %p238 = pneg %p53
      %p239 = pneg %p77
      %p240 = pneg %p74
      %p241 = pneg %p98
      %p242 = pneg %p95
      %p243 = pneg %p124
      %p244 = pneg %p121
      %p245 = scmp.lt.s32.totalorder %s21, 1
      %s246 = scalar_select %p245, %s21, 1
      %s247 = scalar_lea.vmem %s3, %s246
      %p248 = pneg %p150
      %p249 = pneg %p147
      %p250 = scmp.lt.s32.totalorder %s21, 1
      %s251 = scalar_select %p250, %s21, 1
      %s252 = scalar_lea.vmem %s4, %s251
      %p253 = pneg %p176
      %p254 = pneg %p173
      %p255 = scmp.lt.s32.totalorder %s21, 1
      %s256 = scalar_select %p255, %s21, 1
      %s257 = scalar_lea.vmem %s5, %s256
      %s258 = sadd.s32 %s21, %s22
      %p259 = scmp.lt.s32.totalorder %s258, 0
      %s260 = scalar_select %p259, %s258, 0
      %s261 = smul.u32 26, %s260
      %s262 = ssub.s32 25, %s261
      %s263 = smul.u32 128, %s262
      %p264 = scmp.lt.s32.totalorder %s261, 24
      %s265 = scalar_select %p264, %s261, 24
      %s266 = smul.addr %s265, 8
      %s267 = scalar_lea.vmem %s0, %s266
      %s268 = sadd.s32 %s21, %s22
      %p269 = scmp.lt.s32.totalorder %s268, 0
      %s270 = scalar_select %p269, %s268, 0
      %s271 = smul.u32 26, %s270
      %s272 = ssub.s32 25, %s271
      %s273 = smul.u32 128, %s272
      %p274 = scmp.lt.s32.totalorder %s21, 1
      %s275 = scalar_select %p274, %s21, 1
      %s276 = scalar_lea.vmem %s3, %s275
      %p277 = scmp.lt.s32.totalorder %s21, 1
      %s278 = scalar_select %p277, %s21, 1
      %s279 = scalar_lea.vmem %s4, %s278
      %p280 = scmp.lt.s32.totalorder %s21, 1
      %s281 = scalar_select %p280, %s21, 1
      %s282 = scalar_lea.vmem %s5, %s281
      %p283 = scmp.eq.s32.totalorder %s22, 0
      // Predicated region
      $region33: #{deep_attn_mil_forward.1} parent=31 // pred_check
        %p284 = pneg %p283
      $region34: #{deep_attn_mil_forward.1} parent=31 // pred_check_branch
        %286 = sbr.rel (%p284) target = $region36
      $region35: #{deep_attn_mil_forward.1} parent=31 // pred_region
        %vm287 = vcmask 0
        %288 = vst.msk [vmem:[%s276] sm:$0x1] %vm287, -1e+30
        %289 = vst.msk [vmem:[%s279] sm:$0x1] %vm287, 0.0
        %vm290 = vcmask 516096
        %291 = vst.msk [vmem:[%s282] sm:$0x1] %vm290, 0.0
      $region36: #{deep_attn_mil_forward.1} parent=31 // pred_fallthru
        _
      %v292 = vld [vmem:[%s2 + $0x40] sm:$0x1]
      %v293 = vld [vmem:[%s267] sm:$0xff]
      %v294 = vld [vmem:[%s267 + $0x8] sm:$0xff]
      %v295 = vld [vmem:[%s267 + $0x10] sm:$0xff]
      %v296 = vld [vmem:[%s267 + $0x18] sm:$0xff]
      %v297 = vld [vmem:[%s267 + $0x20] sm:$0xff]
      %v298 = vld [vmem:[%s267 + $0x28] sm:$0xff]
      %v299 = vld [vmem:[%s267 + $0x30] sm:$0xff]
      %v300 = vld [vmem:[%s267 + $0x38] sm:$0xff]
      %v301 = vld [vmem:[%s267 + $0x40] sm:$0xff]
      %v302 = vld [vmem:[%s267 + $0x48] sm:$0xff]
      %v303 = vld [vmem:[%s267 + $0x50] sm:$0xff]
      %v304 = vld [vmem:[%s267 + $0x58] sm:$0xff]
      %v305 = vld [vmem:[%s267 + $0x60] sm:$0xff]
      %v306 = vld [vmem:[%s267 + $0x68] sm:$0xff]
      %v307 = vld [vmem:[%s267 + $0x70] sm:$0xff]
      %v308 = vld [vmem:[%s267 + $0x78] sm:$0xff]
      %v309 = vld [vmem:[%s267 + $0x80] sm:$0xff]
      %v310 = vld [vmem:[%s267 + $0x88] sm:$0xff]
      %v311 = vld [vmem:[%s267 + $0x90] sm:$0xff]
      %v312 = vld [vmem:[%s267 + $0x98] sm:$0xff]
      %v313 = vld [vmem:[%s267 + $0xa0] sm:$0xff]
      %v314 = vld [vmem:[%s267 + $0xa8] sm:$0xff]
      %v315 = vld [vmem:[%s267 + $0xb0] sm:$0xff]
      %v316 = vld [vmem:[%s267 + $0xb8] sm:$0xff]
      %v317 = vld [vmem:[%s267 + $0xc0] sm:$0xff]
      %v318 = vld [vmem:[%s267 + $0xc8] sm:$0xff]
      %v319 = vld [vmem:[%s1] sm:$0xff]
      %v320 = vld [vmem:[%s1 + $0x8] sm:$0xff]
      %v321 = vld [vmem:[%s1 + $0x10] sm:$0xff]
      %v322 = vld [vmem:[%s1 + $0x18] sm:$0xff]
      %v323 = vld [vmem:[%s1 + $0x20] sm:$0xff]
      %v324 = vld [vmem:[%s1 + $0x28] sm:$0xff]
      %v325 = vld [vmem:[%s1 + $0x30] sm:$0xff]
      %v326 = vld [vmem:[%s1 + $0x38] sm:$0xff]
      %v327 = vld [vmem:[%s1 + $0x40] sm:$0xff]
      %v328 = vld [vmem:[%s1 + $0x48] sm:$0xff]
      %v329 = vld [vmem:[%s1 + $0x50] sm:$0xff]
      %v330 = vld [vmem:[%s1 + $0x58] sm:$0xff]
      %v331 = vld [vmem:[%s1 + $0x60] sm:$0xff]
      %v332 = vld [vmem:[%s1 + $0x68] sm:$0xff]
      %v333 = vld [vmem:[%s1 + $0x70] sm:$0xff]
      %v334 = vld [vmem:[%s1 + $0x78] sm:$0xff]
      %v335 = vlaneseq
      %v336 = vshrl.u32 %v335, 7
      %v337 = vsub.s32 0, %v336
      %v338 = vrot.slane %v292, %v337
      %339 = vmatprep.subr.mxu0 0.0
      %340 = vmatpush1.msra.mxu0 %v334
      %341 = vmatprep.subr.mxu0 0.0
      %342 = vmatpush1.msra.mxu0 %v333
      %343 = vmatprep.subr.mxu0 0.0
      %344 = vmatpush1.msra.mxu0 %v332
      %345 = vmatprep.subr.mxu0 0.0
      %346 = vmatpush1.msra.mxu0 %v331
      %347 = vmatprep.subr.mxu0 0.0
      %348 = vmatpush1.msra.mxu0 %v330
      %349 = vmatprep.subr.mxu0 0.0
      %350 = vmatpush1.msra.mxu0 %v329
      %351 = vmatprep.subr.mxu0 0.0
      %352 = vmatpush1.msra.mxu0 %v328
      %353 = vmatprep.subr.mxu0 0.0
      %354 = vmatpush1.msra.mxu0 %v327
      %355 = vmatprep.subr.mxu0 0.0
      %356 = vmatpush1.msra.mxu0 %v326
      %357 = vmatprep.subr.mxu0 0.0
      %358 = vmatpush1.msra.mxu0 %v325
      %359 = vmatprep.subr.mxu0 0.0
      %360 = vmatpush1.msra.mxu0 %v324
      %361 = vmatprep.subr.mxu0 0.0
      %362 = vmatpush1.msra.mxu0 %v323
      %363 = vmatprep.subr.mxu0 0.0
      %364 = vmatpush1.msra.mxu0 %v322
      %365 = vmatprep.subr.mxu0 0.0
      %366 = vmatpush1.msra.mxu0 %v321
      %367 = vmatprep.subr.mxu0 0.0
      %368 = vmatpush1.msra.mxu0 %v320
      %369 = vmatprep.subr.mxu0 0.0
      %370 = vmatpush1.msra.mxu0 %v319
      %371 = vmatprep.subr.mxu0 0.0
      %372 = vmatpush2.msra.mxu0 0.0
      %373 = vmatprep.subr.mxu0 0.0
      %374 = vmatpush2.msra.mxu0 0.0
      %375 = vmatprep.subr.mxu0 0.0
      %376 = vmatpush2.msra.mxu0 0.0
      %377 = vmatprep.subr.mxu0 0.0
      %378 = vmatpush2.msra.mxu0 0.0
      %379 = vmatprep.subr.mxu0 0.0
      %380 = vmatpush2.msra.mxu0 0.0
      %381 = vmatprep.subr.mxu0 0.0
      %382 = vmatpush2.msra.mxu0 0.0
      %383 = vmatprep.subr.mxu0 0.0
      %384 = vmatpush2.msra.mxu0 0.0
      %385 = vmatprep.subr.mxu0 0.0
      %386 = vmatpush2.msra.mxu0 0.0
      %387 = vmatprep.subr.mxu0 0.0
      %388 = vmatpush2.msra.mxu0 0.0
      %389 = vmatprep.subr.mxu0 0.0
      %390 = vmatpush2.msra.mxu0 0.0
      %391 = vmatprep.subr.mxu0 0.0
      %392 = vmatpush2.msra.mxu0 0.0
      %393 = vmatprep.subr.mxu0 0.0
      %394 = vmatpush2.msra.mxu0 0.0
      %395 = vmatprep.subr.mxu0 0.0
      %396 = vmatpush2.msra.mxu0 0.0
      %397 = vmatprep.subr.mxu0 0.0
      %398 = vmatpush2.msra.mxu0 0.0
      %399 = vmatprep.subr.mxu0 0.0
      %400 = vmatpush2.msra.mxu0 0.0
      %401 = vmatprep.subr.mxu0 0.0
      %402 = vmatpush2.msra.mxu0 0.0
      %403 = vmatprep.mubr.f32.mxu0 0.0
      %404 = vmatmul.mubr.f32.gmra.mxu0 %v293
      %v405 = vpop.f32.mrf.mxu0
      %v406 = vadd.f32 %v338, %v405
      %v407 = vpop.f32.mrf.mxu0
      %408 = vmatprep.mubr.f32.mxu0 0.0
      %409 = vmatmul.mubr.f32.gmra.mxu0 %v294
      %v410 = vpop.f32.mrf.mxu0
      %v411 = vadd.f32 %v338, %v410
      %v412 = vpop.f32.mrf.mxu0
      %413 = vmatprep.mubr.f32.mxu0 0.0
      %414 = vmatmul.mubr.f32.gmra.mxu0 %v295
      %v415 = vpop.f32.mrf.mxu0
      %v416 = vadd.f32 %v338, %v415
      %v417 = vpop.f32.mrf.mxu0
      %418 = vmatprep.mubr.f32.mxu0 0.0
      %419 = vmatmul.mubr.f32.gmra.mxu0 %v296
      %v420 = vpop.f32.mrf.mxu0
      %v421 = vadd.f32 %v338, %v420
      %v422 = vpop.f32.mrf.mxu0
      %423 = vmatprep.mubr.f32.mxu0 0.0
      %424 = vmatmul.mubr.f32.gmra.mxu0 %v297
      %v425 = vpop.f32.mrf.mxu0
      %v426 = vadd.f32 %v338, %v425
      %v427 = vpop.f32.mrf.mxu0
      %428 = vmatprep.mubr.f32.mxu0 0.0
      %429 = vmatmul.mubr.f32.gmra.mxu0 %v298
      %v430 = vpop.f32.mrf.mxu0
      %v431 = vadd.f32 %v338, %v430
      %v432 = vpop.f32.mrf.mxu0
      %433 = vmatprep.mubr.f32.mxu0 0.0
      %434 = vmatmul.mubr.f32.gmra.mxu0 %v299
      %v435 = vpop.f32.mrf.mxu0
      %v436 = vadd.f32 %v338, %v435
      %v437 = vpop.f32.mrf.mxu0
      %438 = vmatprep.mubr.f32.mxu0 0.0
      %439 = vmatmul.mubr.f32.gmra.mxu0 %v300
      %v440 = vpop.f32.mrf.mxu0
      %v441 = vadd.f32 %v338, %v440
      %v442 = vpop.f32.mrf.mxu0
      %443 = vmatprep.mubr.f32.mxu0 0.0
      %444 = vmatmul.mubr.f32.gmra.mxu0 %v301
      %v445 = vpop.f32.mrf.mxu0
      %v446 = vadd.f32 %v338, %v445
      %v447 = vpop.f32.mrf.mxu0
      %448 = vmatprep.mubr.f32.mxu0 0.0
      %449 = vmatmul.mubr.f32.gmra.mxu0 %v302
      %v450 = vpop.f32.mrf.mxu0
      %v451 = vadd.f32 %v338, %v450
      %v452 = vpop.f32.mrf.mxu0
      %453 = vmatprep.mubr.f32.mxu0 0.0
      %454 = vmatmul.mubr.f32.gmra.mxu0 %v303
      %v455 = vpop.f32.mrf.mxu0
      %v456 = vadd.f32 %v338, %v455
      %v457 = vpop.f32.mrf.mxu0
      %458 = vmatprep.mubr.f32.mxu0 0.0
      %459 = vmatmul.mubr.f32.gmra.mxu0 %v304
      %v460 = vpop.f32.mrf.mxu0
      %v461 = vadd.f32 %v338, %v460
      %v462 = vpop.f32.mrf.mxu0
      %463 = vmatprep.mubr.f32.mxu0 0.0
      %464 = vmatmul.mubr.f32.gmra.mxu0 %v305
      %v465 = vpop.f32.mrf.mxu0
      %v466 = vadd.f32 %v338, %v465
      %v467 = vpop.f32.mrf.mxu0
      %468 = vmatprep.mubr.f32.mxu0 0.0
      %469 = vmatmul.mubr.f32.gmra.mxu0 %v306
      %v470 = vpop.f32.mrf.mxu0
      %v471 = vadd.f32 %v338, %v470
      %v472 = vpop.f32.mrf.mxu0
      %473 = vmatprep.mubr.f32.mxu0 0.0
      %474 = vmatmul.mubr.f32.gmra.mxu0 %v307
      %v475 = vpop.f32.mrf.mxu0
      %v476 = vadd.f32 %v338, %v475
      %v477 = vpop.f32.mrf.mxu0
      %478 = vmatprep.mubr.f32.mxu0 0.0
      %479 = vmatmul.mubr.f32.gmra.mxu0 %v308
      %v480 = vpop.f32.mrf.mxu0
      %v481 = vadd.f32 %v338, %v480
      %v482 = vpop.f32.mrf.mxu0
      %483 = vmatprep.mubr.f32.mxu0 0.0
      %484 = vmatmul.mubr.f32.gmra.mxu0 %v309
      %v485 = vpop.f32.mrf.mxu0
      %v486 = vadd.f32 %v338, %v485
      %v487 = vpop.f32.mrf.mxu0
      %488 = vmatprep.mubr.f32.mxu0 0.0
      %489 = vmatmul.mubr.f32.gmra.mxu0 %v310
      %v490 = vpop.f32.mrf.mxu0
      %v491 = vadd.f32 %v338, %v490
      %v492 = vpop.f32.mrf.mxu0
      %493 = vmatprep.mubr.f32.mxu0 0.0
      %494 = vmatmul.mubr.f32.gmra.mxu0 %v311
      %v495 = vpop.f32.mrf.mxu0
      %v496 = vadd.f32 %v338, %v495
      %v497 = vpop.f32.mrf.mxu0
      %498 = vmatprep.mubr.f32.mxu0 0.0
      %499 = vmatmul.mubr.f32.gmra.mxu0 %v312
      %v500 = vpop.f32.mrf.mxu0
      %v501 = vadd.f32 %v338, %v500
      %v502 = vpop.f32.mrf.mxu0
      %503 = vmatprep.mubr.f32.mxu0 0.0
      %504 = vmatmul.mubr.f32.gmra.mxu0 %v313
      %v505 = vpop.f32.mrf.mxu0
      %v506 = vadd.f32 %v338, %v505
      %v507 = vpop.f32.mrf.mxu0
      %508 = vmatprep.mubr.f32.mxu0 0.0
      %509 = vmatmul.mubr.f32.gmra.mxu0 %v314
      %v510 = vpop.f32.mrf.mxu0
      %v511 = vadd.f32 %v338, %v510
      %v512 = vpop.f32.mrf.mxu0
      %513 = vmatprep.mubr.f32.mxu0 0.0
      %514 = vmatmul.mubr.f32.gmra.mxu0 %v315
      %v515 = vpop.f32.mrf.mxu0
      %v516 = vadd.f32 %v338, %v515
      %v517 = vpop.f32.mrf.mxu0
      %518 = vmatprep.mubr.f32.mxu0 0.0
      %519 = vmatmul.mubr.f32.gmra.mxu0 %v316
      %v520 = vpop.f32.mrf.mxu0
      %v521 = vadd.f32 %v338, %v520
      %v522 = vpop.f32.mrf.mxu0
      %523 = vmatprep.mubr.f32.mxu0 0.0
      %524 = vmatmul.mubr.f32.gmra.mxu0 %v317
      %v525 = vpop.f32.mrf.mxu0
      %v526 = vadd.f32 %v338, %v525
      %v527 = vpop.f32.mrf.mxu0
      %528 = vmatprep.mubr.f32.mxu0 0.0
      %529 = vmatmul.mubr.f32.gmra.mxu0 %v318
      %v530 = vpop.f32.mrf.mxu0
      %v531 = vadd.f32 %v338, %v530
      %v532 = vpop.f32.mrf.mxu0
      %533 = vdwg.mxu0
      %v534 = vmax.f32 %v406, 0.0
      %v535 = vmax.f32 %v411, 0.0
      %v536 = vmax.f32 %v416, 0.0
      %v537 = vmax.f32 %v421, 0.0
      %v538 = vmax.f32 %v426, 0.0
      %v539 = vmax.f32 %v431, 0.0
      %v540 = vmax.f32 %v436, 0.0
      %v541 = vmax.f32 %v441, 0.0
      %v542 = vmax.f32 %v446, 0.0
      %v543 = vmax.f32 %v451, 0.0
      %v544 = vmax.f32 %v456, 0.0
      %v545 = vmax.f32 %v461, 0.0
      %v546 = vmax.f32 %v466, 0.0
      %v547 = vmax.f32 %v471, 0.0
      %v548 = vmax.f32 %v476, 0.0
      %v549 = vmax.f32 %v481, 0.0
      %v550 = vmax.f32 %v486, 0.0
      %v551 = vmax.f32 %v491, 0.0
      %v552 = vmax.f32 %v496, 0.0
      %v553 = vmax.f32 %v501, 0.0
      %v554 = vmax.f32 %v506, 0.0
      %v555 = vmax.f32 %v511, 0.0
      %v556 = vmax.f32 %v516, 0.0
      %v557 = vmax.f32 %v521, 0.0
      %v558 = vmax.f32 %v526, 0.0
      %v559 = vmax.f32 %v531, 0.0
      %s560 = sadd.s32 %s21, %s22
      %s561 = smul.u32 %s560, 208
      %v562 = vlaneseq
      %v563 = vshrl.u32 %v562, 7
      %v564 = vadd.s32 %v563, 8
      %v565 = vadd.s32 %v563, 16
      %v566 = vadd.s32 %v563, 24
      %v567 = vadd.s32 %v563, 32
      %v568 = vadd.s32 %v563, 40
      %v569 = vadd.s32 %v563, 48
      %v570 = vadd.s32 %v563, 56
      %v571 = vadd.s32 %v563, 64
      %v572 = vadd.s32 %v563, 72
      %v573 = vadd.s32 %v563, 80
      %v574 = vadd.s32 %v563, 88
      %v575 = vadd.s32 %v563, 96
      %v576 = vadd.s32 %v563, 104
      %v577 = vadd.s32 %v563, 112
      %v578 = vadd.s32 %v563, 120
      %v579 = vadd.s32 %v563, 128
      %v580 = vadd.s32 %v563, 136
      %v581 = vadd.s32 %v563, 144
      %v582 = vadd.s32 %v563, 152
      %v583 = vadd.s32 %v563, 160
      %v584 = vadd.s32 %v563, 168
      %v585 = vadd.s32 %v563, 176
      %v586 = vadd.s32 %v563, 184
      %v587 = vadd.s32 %v563, 192
      %v588 = vadd.s32 %v563, 200
      %v589 = vstv %s561
      %v590 = vadd.s32 %v589, %v563
      %v591 = vadd.s32 %v589, %v564
      %v592 = vadd.s32 %v589, %v565
      %v593 = vadd.s32 %v589, %v566
      %v594 = vadd.s32 %v589, %v567
      %v595 = vadd.s32 %v589, %v568
      %v596 = vadd.s32 %v589, %v569
      %v597 = vadd.s32 %v589, %v570
      %v598 = vadd.s32 %v589, %v571
      %v599 = vadd.s32 %v589, %v572
      %v600 = vadd.s32 %v589, %v573
      %v601 = vadd.s32 %v589, %v574
      %v602 = vadd.s32 %v589, %v575
      %v603 = vadd.s32 %v589, %v576
      %v604 = vadd.s32 %v589, %v577
      %v605 = vadd.s32 %v589, %v578
      %v606 = vadd.s32 %v589, %v579
      %v607 = vadd.s32 %v589, %v580
      %v608 = vadd.s32 %v589, %v581
      %v609 = vadd.s32 %v589, %v582
      %v610 = vadd.s32 %v589, %v583
      %v611 = vadd.s32 %v589, %v584
      %v612 = vadd.s32 %v589, %v585
      %v613 = vadd.s32 %v589, %v586
      %v614 = vadd.s32 %v589, %v587
      %v615 = vadd.s32 %v589, %v588
      %vm616 = vcmp.lt.s32.totalorder %v590, 200
      %vm617 = vcmp.lt.s32.totalorder %v591, 200
      %vm618 = vcmp.lt.s32.totalorder %v592, 200
      %vm619 = vcmp.lt.s32.totalorder %v593, 200
      %vm620 = vcmp.lt.s32.totalorder %v594, 200
      %vm621 = vcmp.lt.s32.totalorder %v595, 200
      %vm622 = vcmp.lt.s32.totalorder %v596, 200
      %vm623 = vcmp.lt.s32.totalorder %v597, 200
      %vm624 = vcmp.lt.s32.totalorder %v598, 200
      %vm625 = vcmp.lt.s32.totalorder %v599, 200
      %vm626 = vcmp.lt.s32.totalorder %v600, 200
      %vm627 = vcmp.lt.s32.totalorder %v601, 200
      %vm628 = vcmp.lt.s32.totalorder %v602, 200
      %vm629 = vcmp.lt.s32.totalorder %v603, 200
      %vm630 = vcmp.lt.s32.totalorder %v604, 200
      %vm631 = vcmp.lt.s32.totalorder %v605, 200
      %vm632 = vcmp.lt.s32.totalorder %v606, 200
      %vm633 = vcmp.lt.s32.totalorder %v607, 200
      %vm634 = vcmp.lt.s32.totalorder %v608, 200
      %vm635 = vcmp.lt.s32.totalorder %v609, 200
      %vm636 = vcmp.lt.s32.totalorder %v610, 200
      %vm637 = vcmp.lt.s32.totalorder %v611, 200
      %vm638 = vcmp.lt.s32.totalorder %v612, 200
      %vm639 = vcmp.lt.s32.totalorder %v613, 200
      %vm640 = vcmp.lt.s32.totalorder %v614, 200
      %vm641 = vcmp.lt.s32.totalorder %v615, 200
      %v642 = vsel %vm616, 1, 0
      %v643 = vsel %vm617, 1, 0
      %v644 = vsel %vm618, 1, 0
      %v645 = vsel %vm619, 1, 0
      %v646 = vsel %vm620, 1, 0
      %v647 = vsel %vm621, 1, 0
      %v648 = vsel %vm622, 1, 0
      %v649 = vsel %vm623, 1, 0
      %v650 = vsel %vm624, 1, 0
      %v651 = vsel %vm625, 1, 0
      %v652 = vsel %vm626, 1, 0
      %v653 = vsel %vm627, 1, 0
      %v654 = vsel %vm628, 1, 0
      %v655 = vsel %vm629, 1, 0
      %v656 = vsel %vm630, 1, 0
      %v657 = vsel %vm631, 1, 0
      %v658 = vsel %vm632, 1, 0
      %v659 = vsel %vm633, 1, 0
      %v660 = vsel %vm634, 1, 0
      %v661 = vsel %vm635, 1, 0
      %v662 = vsel %vm636, 1, 0
      %v663 = vsel %vm637, 1, 0
      %v664 = vsel %vm638, 1, 0
      %v665 = vsel %vm639, 1, 0
      %v666 = vsel %vm640, 1, 0
      %v667 = vsel %vm641, 1, 0
      %vm668 = vcmp.eq.s32.totalorder %v642, 1
      %vm669 = vcmp.eq.s32.totalorder %v643, 1
      %vm670 = vcmp.eq.s32.totalorder %v644, 1
      %vm671 = vcmp.eq.s32.totalorder %v645, 1
      %vm672 = vcmp.eq.s32.totalorder %v646, 1
      %vm673 = vcmp.eq.s32.totalorder %v647, 1
      %vm674 = vcmp.eq.s32.totalorder %v648, 1
      %vm675 = vcmp.eq.s32.totalorder %v649, 1
      %vm676 = vcmp.eq.s32.totalorder %v650, 1
      %vm677 = vcmp.eq.s32.totalorder %v651, 1
      %vm678 = vcmp.eq.s32.totalorder %v652, 1
      %vm679 = vcmp.eq.s32.totalorder %v653, 1
      %vm680 = vcmp.eq.s32.totalorder %v654, 1
      %vm681 = vcmp.eq.s32.totalorder %v655, 1
      %vm682 = vcmp.eq.s32.totalorder %v656, 1
      %vm683 = vcmp.eq.s32.totalorder %v657, 1
      %vm684 = vcmp.eq.s32.totalorder %v658, 1
      %vm685 = vcmp.eq.s32.totalorder %v659, 1
      %vm686 = vcmp.eq.s32.totalorder %v660, 1
      %vm687 = vcmp.eq.s32.totalorder %v661, 1
      %vm688 = vcmp.eq.s32.totalorder %v662, 1
      %vm689 = vcmp.eq.s32.totalorder %v663, 1
      %vm690 = vcmp.eq.s32.totalorder %v664, 1
      %vm691 = vcmp.eq.s32.totalorder %v665, 1
      %vm692 = vcmp.eq.s32.totalorder %v666, 1
      %vm693 = vcmp.eq.s32.totalorder %v667, 1
      %v694 = vsel %vm668, %v534, 0.0
      %v695 = vsel %vm669, %v535, 0.0
      %v696 = vsel %vm670, %v536, 0.0
      %v697 = vsel %vm671, %v537, 0.0
      %v698 = vsel %vm672, %v538, 0.0
      %v699 = vsel %vm673, %v539, 0.0
      %v700 = vsel %vm674, %v540, 0.0
      %v701 = vsel %vm675, %v541, 0.0
      %v702 = vsel %vm676, %v542, 0.0
      %v703 = vsel %vm677, %v543, 0.0
      %v704 = vsel %vm678, %v544, 0.0
      %v705 = vsel %vm679, %v545, 0.0
      %v706 = vsel %vm680, %v546, 0.0
      %v707 = vsel %vm681, %v547, 0.0
      %v708 = vsel %vm682, %v548, 0.0
      %v709 = vsel %vm683, %v549, 0.0
      %v710 = vsel %vm684, %v550, 0.0
      %v711 = vsel %vm685, %v551, 0.0
      %v712 = vsel %vm686, %v552, 0.0
      %v713 = vsel %vm687, %v553, 0.0
      %v714 = vsel %vm688, %v554, 0.0
      %v715 = vsel %vm689, %v555, 0.0
      %v716 = vsel %vm690, %v556, 0.0
      %v717 = vsel %vm691, %v557, 0.0
      %v718 = vsel %vm692, %v558, 0.0
      %v719 = vsel %vm693, %v559, 0.0
      %v720 = vld [vmem:[%s2] sm:$0xff]
      %v721 = vld [vmem:[%s2 + $0x8] sm:$0xff]
      %v722 = vld [vmem:[%s2 + $0x10] sm:$0xff]
      %v723 = vld [vmem:[%s2 + $0x18] sm:$0xff]
      %v724 = vld [vmem:[%s2 + $0x20] sm:$0xff]
      %v725 = vld [vmem:[%s2 + $0x28] sm:$0xff]
      %v726 = vld [vmem:[%s2 + $0x30] sm:$0xff]
      %v727 = vld [vmem:[%s2 + $0x38] sm:$0xff]
      %v728 = vld [vmem:[%s2 + $0x41] sm:$0x1]
      %v729 = vld [vmem:[%s2 + $0x42] sm:$0x1]
      %v730 = vlaneseq
      %v731 = vshrl.u32 %v730, 7
      %v732 = vsub.s32 0, %v731
      %v733 = vrot.slane %v728, %v732
      %vm734 = vcmask 523264
      %v736 = vsel %vm734, %v694, 0
      %v739 = vsel %vm734, %v695, 0
      %v742 = vsel %vm734, %v696, 0
      %v745 = vsel %vm734, %v697, 0
      %v748 = vsel %vm734, %v698, 0
      %v751 = vsel %vm734, %v699, 0
      %v754 = vsel %vm734, %v700, 0
      %v757 = vsel %vm734, %v701, 0
      %v760 = vsel %vm734, %v702, 0
      %v763 = vsel %vm734, %v703, 0
      %v766 = vsel %vm734, %v704, 0
      %v769 = vsel %vm734, %v705, 0
      %v772 = vsel %vm734, %v706, 0
      %v775 = vsel %vm734, %v707, 0
      %v778 = vsel %vm734, %v708, 0
      %v781 = vsel %vm734, %v709, 0
      %v784 = vsel %vm734, %v710, 0
      %v787 = vsel %vm734, %v711, 0
      %v790 = vsel %vm734, %v712, 0
      %v793 = vsel %vm734, %v713, 0
      %v796 = vsel %vm734, %v714, 0
      %v799 = vsel %vm734, %v715, 0
      %v802 = vsel %vm734, %v716, 0
      %v805 = vsel %vm734, %v717, 0
      %v808 = vsel %vm734, %v718, 0
      %v811 = vsel %vm734, %v719, 0
      %813 = vmatprep.subr.mxu0 0.0
      %814 = vmatpush1.msra.mxu0 0.0
      %815 = vmatprep.subr.mxu0 0.0
      %816 = vmatpush1.msra.mxu0 0.0
      %817 = vmatprep.subr.mxu0 0.0
      %818 = vmatpush1.msra.mxu0 0.0
      %819 = vmatprep.subr.mxu0 0.0
      %820 = vmatpush1.msra.mxu0 0.0
      %821 = vmatprep.subr.mxu0 0.0
      %822 = vmatpush1.msra.mxu0 0.0
      %823 = vmatprep.subr.mxu0 0.0
      %824 = vmatpush1.msra.mxu0 0.0
      %825 = vmatprep.subr.mxu0 0.0
      %826 = vmatpush1.msra.mxu0 0.0
      %827 = vmatprep.subr.mxu0 0.0
      %828 = vmatpush1.msra.mxu0 0.0
      %829 = vmatprep.subr.mxu0 0.0
      %830 = vmatpush1.msra.mxu0 %v727
      %831 = vmatprep.subr.mxu0 0.0
      %832 = vmatpush1.msra.mxu0 %v726
      %833 = vmatprep.subr.mxu0 0.0
      %834 = vmatpush1.msra.mxu0 %v725
      %835 = vmatprep.subr.mxu0 0.0
      %836 = vmatpush1.msra.mxu0 %v724
      %837 = vmatprep.subr.mxu0 0.0
      %838 = vmatpush1.msra.mxu0 %v723
      %839 = vmatprep.subr.mxu0 0.0
      %840 = vmatpush1.msra.mxu0 %v722
      %841 = vmatprep.subr.mxu0 0.0
      %842 = vmatpush1.msra.mxu0 %v721
      %843 = vmatprep.subr.mxu0 0.0
      %844 = vmatpush1.msra.mxu0 %v720
      %845 = vmatprep.subr.mxu0 0.0
      %846 = vmatpush2.msra.mxu0 0.0
      %847 = vmatprep.subr.mxu0 0.0
      %848 = vmatpush2.msra.mxu0 0.0
      %849 = vmatprep.subr.mxu0 0.0
      %850 = vmatpush2.msra.mxu0 0.0
      %851 = vmatprep.subr.mxu0 0.0
      %852 = vmatpush2.msra.mxu0 0.0
      %853 = vmatprep.subr.mxu0 0.0
      %854 = vmatpush2.msra.mxu0 0.0
      %855 = vmatprep.subr.mxu0 0.0
      %856 = vmatpush2.msra.mxu0 0.0
      %857 = vmatprep.subr.mxu0 0.0
      %858 = vmatpush2.msra.mxu0 0.0
      %859 = vmatprep.subr.mxu0 0.0
      %860 = vmatpush2.msra.mxu0 0.0
      %861 = vmatprep.subr.mxu0 0.0
      %862 = vmatpush2.msra.mxu0 0.0
      %863 = vmatprep.subr.mxu0 0.0
      %864 = vmatpush2.msra.mxu0 0.0
      %865 = vmatprep.subr.mxu0 0.0
      %866 = vmatpush2.msra.mxu0 0.0
      %867 = vmatprep.subr.mxu0 0.0
      %868 = vmatpush2.msra.mxu0 0.0
      %869 = vmatprep.subr.mxu0 0.0
      %870 = vmatpush2.msra.mxu0 0.0
      %871 = vmatprep.subr.mxu0 0.0
      %872 = vmatpush2.msra.mxu0 0.0
      %873 = vmatprep.subr.mxu0 0.0
      %874 = vmatpush2.msra.mxu0 0.0
      %875 = vmatprep.subr.mxu0 0.0
      %876 = vmatpush2.msra.mxu0 0.0
      %877 = vmatprep.mubr.f32.mxu0 0.0
      %878 = vmatmul.mubr.f32.gmra.mxu0 %v736
      %v879 = vpop.f32.mrf.mxu0
      %v880 = vadd.f32 %v733, %v879
      %v881 = vpop.f32.mrf.mxu0
      %882 = vmatprep.mubr.f32.mxu0 0.0
      %883 = vmatmul.mubr.f32.gmra.mxu0 %v739
      %v884 = vpop.f32.mrf.mxu0
      %v885 = vadd.f32 %v733, %v884
      %v886 = vpop.f32.mrf.mxu0
      %887 = vmatprep.mubr.f32.mxu0 0.0
      %888 = vmatmul.mubr.f32.gmra.mxu0 %v742
      %v889 = vpop.f32.mrf.mxu0
      %v890 = vadd.f32 %v733, %v889
      %v891 = vpop.f32.mrf.mxu0
      %892 = vmatprep.mubr.f32.mxu0 0.0
      %893 = vmatmul.mubr.f32.gmra.mxu0 %v745
      %v894 = vpop.f32.mrf.mxu0
      %v895 = vadd.f32 %v733, %v894
      %v896 = vpop.f32.mrf.mxu0
      %897 = vmatprep.mubr.f32.mxu0 0.0
      %898 = vmatmul.mubr.f32.gmra.mxu0 %v748
      %v899 = vpop.f32.mrf.mxu0
      %v900 = vadd.f32 %v733, %v899
      %v901 = vpop.f32.mrf.mxu0
      %902 = vmatprep.mubr.f32.mxu0 0.0
      %903 = vmatmul.mubr.f32.gmra.mxu0 %v751
      %v904 = vpop.f32.mrf.mxu0
      %v905 = vadd.f32 %v733, %v904
      %v906 = vpop.f32.mrf.mxu0
      %907 = vmatprep.mubr.f32.mxu0 0.0
      %908 = vmatmul.mubr.f32.gmra.mxu0 %v754
      %v909 = vpop.f32.mrf.mxu0
      %v910 = vadd.f32 %v733, %v909
      %v911 = vpop.f32.mrf.mxu0
      %912 = vmatprep.mubr.f32.mxu0 0.0
      %913 = vmatmul.mubr.f32.gmra.mxu0 %v757
      %v914 = vpop.f32.mrf.mxu0
      %v915 = vadd.f32 %v733, %v914
      %v916 = vpop.f32.mrf.mxu0
      %917 = vmatprep.mubr.f32.mxu0 0.0
      %918 = vmatmul.mubr.f32.gmra.mxu0 %v760
      %v919 = vpop.f32.mrf.mxu0
      %v920 = vadd.f32 %v733, %v919
      %v921 = vpop.f32.mrf.mxu0
      %922 = vmatprep.mubr.f32.mxu0 0.0
      %923 = vmatmul.mubr.f32.gmra.mxu0 %v763
      %v924 = vpop.f32.mrf.mxu0
      %v925 = vadd.f32 %v733, %v924
      %v926 = vpop.f32.mrf.mxu0
      %927 = vmatprep.mubr.f32.mxu0 0.0
      %928 = vmatmul.mubr.f32.gmra.mxu0 %v766
      %v929 = vpop.f32.mrf.mxu0
      %v930 = vadd.f32 %v733, %v929
      %v931 = vpop.f32.mrf.mxu0
      %932 = vmatprep.mubr.f32.mxu0 0.0
      %933 = vmatmul.mubr.f32.gmra.mxu0 %v769
      %v934 = vpop.f32.mrf.mxu0
      %v935 = vadd.f32 %v733, %v934
      %v936 = vpop.f32.mrf.mxu0
      %937 = vmatprep.mubr.f32.mxu0 0.0
      %938 = vmatmul.mubr.f32.gmra.mxu0 %v772
      %v939 = vpop.f32.mrf.mxu0
      %v940 = vadd.f32 %v733, %v939
      %v941 = vpop.f32.mrf.mxu0
      %942 = vmatprep.mubr.f32.mxu0 0.0
      %943 = vmatmul.mubr.f32.gmra.mxu0 %v775
      %v944 = vpop.f32.mrf.mxu0
      %v945 = vadd.f32 %v733, %v944
      %v946 = vpop.f32.mrf.mxu0
      %947 = vmatprep.mubr.f32.mxu0 0.0
      %948 = vmatmul.mubr.f32.gmra.mxu0 %v778
      %v949 = vpop.f32.mrf.mxu0
      %v950 = vadd.f32 %v733, %v949
      %v951 = vpop.f32.mrf.mxu0
      %952 = vmatprep.mubr.f32.mxu0 0.0
      %953 = vmatmul.mubr.f32.gmra.mxu0 %v781
      %v954 = vpop.f32.mrf.mxu0
      %v955 = vadd.f32 %v733, %v954
      %v956 = vpop.f32.mrf.mxu0
      %957 = vmatprep.mubr.f32.mxu0 0.0
      %958 = vmatmul.mubr.f32.gmra.mxu0 %v784
      %v959 = vpop.f32.mrf.mxu0
      %v960 = vadd.f32 %v733, %v959
      %v961 = vpop.f32.mrf.mxu0
      %962 = vmatprep.mubr.f32.mxu0 0.0
      %963 = vmatmul.mubr.f32.gmra.mxu0 %v787
      %v964 = vpop.f32.mrf.mxu0
      %v965 = vadd.f32 %v733, %v964
      %v966 = vpop.f32.mrf.mxu0
      %967 = vmatprep.mubr.f32.mxu0 0.0
      %968 = vmatmul.mubr.f32.gmra.mxu0 %v790
      %v969 = vpop.f32.mrf.mxu0
      %v970 = vadd.f32 %v733, %v969
      %v971 = vpop.f32.mrf.mxu0
      %972 = vmatprep.mubr.f32.mxu0 0.0
      %973 = vmatmul.mubr.f32.gmra.mxu0 %v793
      %v974 = vpop.f32.mrf.mxu0
      %v975 = vadd.f32 %v733, %v974
      %v976 = vpop.f32.mrf.mxu0
      %977 = vmatprep.mubr.f32.mxu0 0.0
      %978 = vmatmul.mubr.f32.gmra.mxu0 %v796
      %v979 = vpop.f32.mrf.mxu0
      %v980 = vadd.f32 %v733, %v979
      %v981 = vpop.f32.mrf.mxu0
      %982 = vmatprep.mubr.f32.mxu0 0.0
      %983 = vmatmul.mubr.f32.gmra.mxu0 %v799
      %v984 = vpop.f32.mrf.mxu0
      %v985 = vadd.f32 %v733, %v984
      %v986 = vpop.f32.mrf.mxu0
      %987 = vmatprep.mubr.f32.mxu0 0.0
      %988 = vmatmul.mubr.f32.gmra.mxu0 %v802
      %v989 = vpop.f32.mrf.mxu0
      %v990 = vadd.f32 %v733, %v989
      %v991 = vpop.f32.mrf.mxu0
      %992 = vmatprep.mubr.f32.mxu0 0.0
      %993 = vmatmul.mubr.f32.gmra.mxu0 %v805
      %v994 = vpop.f32.mrf.mxu0
      %v995 = vadd.f32 %v733, %v994
      %v996 = vpop.f32.mrf.mxu0
      %997 = vmatprep.mubr.f32.mxu0 0.0
      %998 = vmatmul.mubr.f32.gmra.mxu0 %v808
      %v999 = vpop.f32.mrf.mxu0
      %v1000 = vadd.f32 %v733, %v999
      %v1001 = vpop.f32.mrf.mxu0
      %1002 = vmatprep.mubr.f32.mxu0 0.0
      %1003 = vmatmul.mubr.f32.gmra.mxu0 %v811
      %v1004 = vpop.f32.mrf.mxu0
      %v1005 = vadd.f32 %v733, %v1004
      %v1006 = vpop.f32.mrf.mxu0
      %1007 = vdwg.mxu0
      %v1008 = vtanh.pop %v880
      %v1009 = vtanh.pop %v885
      %v1010 = vtanh.pop %v890
      %v1011 = vtanh.pop %v895
      %v1012 = vtanh.pop %v900
      %v1013 = vtanh.pop %v905
      %v1014 = vtanh.pop %v910
      %v1015 = vtanh.pop %v915
      %v1016 = vtanh.pop %v920
      %v1017 = vtanh.pop %v925
      %v1018 = vtanh.pop %v930
      %v1019 = vtanh.pop %v935
      %v1020 = vtanh.pop %v940
      %v1021 = vtanh.pop %v945
      %v1022 = vtanh.pop %v950
      %v1023 = vtanh.pop %v955
      %v1024 = vtanh.pop %v960
      %v1025 = vtanh.pop %v965
      %v1026 = vtanh.pop %v970
      %v1027 = vtanh.pop %v975
      %v1028 = vtanh.pop %v980
      %v1029 = vtanh.pop %v985
      %v1030 = vtanh.pop %v990
      %v1031 = vtanh.pop %v995
      %v1032 = vtanh.pop %v1000
      %v1033 = vtanh.pop %v1005
      %v1034 = vlaneseq
      %v1035 = vshrl.u32 %v1034, 7
      %v1036 = vsub.s32 0, %v1035
      %v1037 = vrot.slane %v729, %v1036
      %1042 = vrot.lane.b32.xlu0 %v720, 96
      %v1043 = vpop.permute.xlu0 %1042
      %1044 = vrot.lane.b32.xlu0 %v721, 96
      %v1045 = vpop.permute.xlu0 %1044
      %1046 = vrot.lane.b32.xlu0 %v722, 96
      %v1047 = vpop.permute.xlu0 %1046
      %1048 = vrot.lane.b32.xlu0 %v723, 96
      %v1049 = vpop.permute.xlu0 %1048
      %vm1054 = vcmask 261120
      %v1056 = vsel %vm1054, %v1008, 0
      %v1059 = vsel %vm1054, %v1009, 0
      %v1062 = vsel %vm1054, %v1010, 0
      %v1065 = vsel %vm1054, %v1011, 0
      %v1068 = vsel %vm1054, %v1012, 0
      %v1071 = vsel %vm1054, %v1013, 0
      %v1074 = vsel %vm1054, %v1014, 0
      %v1077 = vsel %vm1054, %v1015, 0
      %v1080 = vsel %vm1054, %v1016, 0
      %v1083 = vsel %vm1054, %v1017, 0
      %v1086 = vsel %vm1054, %v1018, 0
      %v1089 = vsel %vm1054, %v1019, 0
      %v1092 = vsel %vm1054, %v1020, 0
      %v1095 = vsel %vm1054, %v1021, 0
      %v1098 = vsel %vm1054, %v1022, 0
      %v1101 = vsel %vm1054, %v1023, 0
      %v1104 = vsel %vm1054, %v1024, 0
      %v1107 = vsel %vm1054, %v1025, 0
      %v1110 = vsel %vm1054, %v1026, 0
      %v1113 = vsel %vm1054, %v1027, 0
      %v1116 = vsel %vm1054, %v1028, 0
      %v1119 = vsel %vm1054, %v1029, 0
      %v1122 = vsel %vm1054, %v1030, 0
      %v1125 = vsel %vm1054, %v1031, 0
      %v1128 = vsel %vm1054, %v1032, 0
      %v1131 = vsel %vm1054, %v1033, 0
      %1133 = vmatprep.subr.mxu0 0.0
      %1134 = vmatpush1.msra.mxu0 0.0
      %1135 = vmatprep.subr.mxu0 0.0
      %1136 = vmatpush1.msra.mxu0 0.0
      %1137 = vmatprep.subr.mxu0 0.0
      %1138 = vmatpush1.msra.mxu0 0.0
      %1139 = vmatprep.subr.mxu0 0.0
      %1140 = vmatpush1.msra.mxu0 0.0
      %1141 = vmatprep.subr.mxu0 0.0
      %1142 = vmatpush1.msra.mxu0 0.0
      %1143 = vmatprep.subr.mxu0 0.0
      %1144 = vmatpush1.msra.mxu0 0.0
      %1145 = vmatprep.subr.mxu0 0.0
      %1146 = vmatpush1.msra.mxu0 0.0
      %1147 = vmatprep.subr.mxu0 0.0
      %1148 = vmatpush1.msra.mxu0 0.0
      %1149 = vmatprep.subr.mxu0 0.0
      %1150 = vmatpush1.msra.mxu0 0.0
      %1151 = vmatprep.subr.mxu0 0.0
      %1152 = vmatpush1.msra.mxu0 0.0
      %1153 = vmatprep.subr.mxu0 0.0
      %1154 = vmatpush1.msra.mxu0 0.0
      %1155 = vmatprep.subr.mxu0 0.0
      %1156 = vmatpush1.msra.mxu0 0.0
      %1157 = vmatprep.subr.mxu0 0.0
      %1158 = vmatpush1.msra.mxu0 %v1049
      %1159 = vmatprep.subr.mxu0 0.0
      %1160 = vmatpush1.msra.mxu0 %v1047
      %1161 = vmatprep.subr.mxu0 0.0
      %1162 = vmatpush1.msra.mxu0 %v1045
      %1163 = vmatprep.subr.mxu0 0.0
      %1164 = vmatpush1.msra.mxu0 %v1043
      %1165 = vmatprep.subr.mxu0 0.0
      %1166 = vmatpush2.msra.mxu0 0.0
      %1167 = vmatprep.subr.mxu0 0.0
      %1168 = vmatpush2.msra.mxu0 0.0
      %1169 = vmatprep.subr.mxu0 0.0
      %1170 = vmatpush2.msra.mxu0 0.0
      %1171 = vmatprep.subr.mxu0 0.0
      %1172 = vmatpush2.msra.mxu0 0.0
      %1173 = vmatprep.subr.mxu0 0.0
      %1174 = vmatpush2.msra.mxu0 0.0
      %1175 = vmatprep.subr.mxu0 0.0
      %1176 = vmatpush2.msra.mxu0 0.0
      %1177 = vmatprep.subr.mxu0 0.0
      %1178 = vmatpush2.msra.mxu0 0.0
      %1179 = vmatprep.subr.mxu0 0.0
      %1180 = vmatpush2.msra.mxu0 0.0
      %1181 = vmatprep.subr.mxu0 0.0
      %1182 = vmatpush2.msra.mxu0 0.0
      %1183 = vmatprep.subr.mxu0 0.0
      %1184 = vmatpush2.msra.mxu0 0.0
      %1185 = vmatprep.subr.mxu0 0.0
      %1186 = vmatpush2.msra.mxu0 0.0
      %1187 = vmatprep.subr.mxu0 0.0
      %1188 = vmatpush2.msra.mxu0 0.0
      %1189 = vmatprep.subr.mxu0 0.0
      %1190 = vmatpush2.msra.mxu0 0.0
      %1191 = vmatprep.subr.mxu0 0.0
      %1192 = vmatpush2.msra.mxu0 0.0
      %1193 = vmatprep.subr.mxu0 0.0
      %1194 = vmatpush2.msra.mxu0 0.0
      %1195 = vmatprep.subr.mxu0 0.0
      %1196 = vmatpush2.msra.mxu0 0.0
      %1197 = vmatprep.mubr.f32.mxu0 0.0
      %1198 = vmatmul.mubr.f32.gmra.mxu0 %v1056
      %v1199 = vpop.f32.mrf.mxu0
      %v1200 = vadd.f32 %v1037, %v1199
      %v1201 = vpop.f32.mrf.mxu0
      %1202 = vmatprep.mubr.f32.mxu0 0.0
      %1203 = vmatmul.mubr.f32.gmra.mxu0 %v1059
      %v1204 = vpop.f32.mrf.mxu0
      %v1205 = vadd.f32 %v1037, %v1204
      %v1206 = vpop.f32.mrf.mxu0
      %1207 = vmatprep.mubr.f32.mxu0 0.0
      %1208 = vmatmul.mubr.f32.gmra.mxu0 %v1062
      %v1209 = vpop.f32.mrf.mxu0
      %v1210 = vadd.f32 %v1037, %v1209
      %v1211 = vpop.f32.mrf.mxu0
      %1212 = vmatprep.mubr.f32.mxu0 0.0
      %1213 = vmatmul.mubr.f32.gmra.mxu0 %v1065
      %v1214 = vpop.f32.mrf.mxu0
      %v1215 = vadd.f32 %v1037, %v1214
      %v1216 = vpop.f32.mrf.mxu0
      %1217 = vmatprep.mubr.f32.mxu0 0.0
      %1218 = vmatmul.mubr.f32.gmra.mxu0 %v1068
      %v1219 = vpop.f32.mrf.mxu0
      %v1220 = vadd.f32 %v1037, %v1219
      %v1221 = vpop.f32.mrf.mxu0
      %1222 = vmatprep.mubr.f32.mxu0 0.0
      %1223 = vmatmul.mubr.f32.gmra.mxu0 %v1071
      %v1224 = vpop.f32.mrf.mxu0
      %v1225 = vadd.f32 %v1037, %v1224
      %v1226 = vpop.f32.mrf.mxu0
      %1227 = vmatprep.mubr.f32.mxu0 0.0
      %1228 = vmatmul.mubr.f32.gmra.mxu0 %v1074
      %v1229 = vpop.f32.mrf.mxu0
      %v1230 = vadd.f32 %v1037, %v1229
      %v1231 = vpop.f32.mrf.mxu0
      %1232 = vmatprep.mubr.f32.mxu0 0.0
      %1233 = vmatmul.mubr.f32.gmra.mxu0 %v1077
      %v1234 = vpop.f32.mrf.mxu0
      %v1235 = vadd.f32 %v1037, %v1234
      %v1236 = vpop.f32.mrf.mxu0
      %1237 = vmatprep.mubr.f32.mxu0 0.0
      %1238 = vmatmul.mubr.f32.gmra.mxu0 %v1080
      %v1239 = vpop.f32.mrf.mxu0
      %v1240 = vadd.f32 %v1037, %v1239
      %v1241 = vpop.f32.mrf.mxu0
      %1242 = vmatprep.mubr.f32.mxu0 0.0
      %1243 = vmatmul.mubr.f32.gmra.mxu0 %v1083
      %v1244 = vpop.f32.mrf.mxu0
      %v1245 = vadd.f32 %v1037, %v1244
      %v1246 = vpop.f32.mrf.mxu0
      %1247 = vmatprep.mubr.f32.mxu0 0.0
      %1248 = vmatmul.mubr.f32.gmra.mxu0 %v1086
      %v1249 = vpop.f32.mrf.mxu0
      %v1250 = vadd.f32 %v1037, %v1249
      %v1251 = vpop.f32.mrf.mxu0
      %1252 = vmatprep.mubr.f32.mxu0 0.0
      %1253 = vmatmul.mubr.f32.gmra.mxu0 %v1089
      %v1254 = vpop.f32.mrf.mxu0
      %v1255 = vadd.f32 %v1037, %v1254
      %v1256 = vpop.f32.mrf.mxu0
      %1257 = vmatprep.mubr.f32.mxu0 0.0
      %1258 = vmatmul.mubr.f32.gmra.mxu0 %v1092
      %v1259 = vpop.f32.mrf.mxu0
      %v1260 = vadd.f32 %v1037, %v1259
      %v1261 = vpop.f32.mrf.mxu0
      %1262 = vmatprep.mubr.f32.mxu0 0.0
      %1263 = vmatmul.mubr.f32.gmra.mxu0 %v1095
      %v1264 = vpop.f32.mrf.mxu0
      %v1265 = vadd.f32 %v1037, %v1264
      %v1266 = vpop.f32.mrf.mxu0
      %1267 = vmatprep.mubr.f32.mxu0 0.0
      %1268 = vmatmul.mubr.f32.gmra.mxu0 %v1098
      %v1269 = vpop.f32.mrf.mxu0
      %v1270 = vadd.f32 %v1037, %v1269
      %v1271 = vpop.f32.mrf.mxu0
      %1272 = vmatprep.mubr.f32.mxu0 0.0
      %1273 = vmatmul.mubr.f32.gmra.mxu0 %v1101
      %v1274 = vpop.f32.mrf.mxu0
      %v1275 = vadd.f32 %v1037, %v1274
      %v1276 = vpop.f32.mrf.mxu0
      %1277 = vmatprep.mubr.f32.mxu0 0.0
      %1278 = vmatmul.mubr.f32.gmra.mxu0 %v1104
      %v1279 = vpop.f32.mrf.mxu0
      %v1280 = vadd.f32 %v1037, %v1279
      %v1281 = vpop.f32.mrf.mxu0
      %1282 = vmatprep.mubr.f32.mxu0 0.0
      %1283 = vmatmul.mubr.f32.gmra.mxu0 %v1107
      %v1284 = vpop.f32.mrf.mxu0
      %v1285 = vadd.f32 %v1037, %v1284
      %v1286 = vpop.f32.mrf.mxu0
      %1287 = vmatprep.mubr.f32.mxu0 0.0
      %1288 = vmatmul.mubr.f32.gmra.mxu0 %v1110
      %v1289 = vpop.f32.mrf.mxu0
      %v1290 = vadd.f32 %v1037, %v1289
      %v1291 = vpop.f32.mrf.mxu0
      %1292 = vmatprep.mubr.f32.mxu0 0.0
      %1293 = vmatmul.mubr.f32.gmra.mxu0 %v1113
      %v1294 = vpop.f32.mrf.mxu0
      %v1295 = vadd.f32 %v1037, %v1294
      %v1296 = vpop.f32.mrf.mxu0
      %1297 = vmatprep.mubr.f32.mxu0 0.0
      %1298 = vmatmul.mubr.f32.gmra.mxu0 %v1116
      %v1299 = vpop.f32.mrf.mxu0
      %v1300 = vadd.f32 %v1037, %v1299
      %v1301 = vpop.f32.mrf.mxu0
      %1302 = vmatprep.mubr.f32.mxu0 0.0
      %1303 = vmatmul.mubr.f32.gmra.mxu0 %v1119
      %v1304 = vpop.f32.mrf.mxu0
      %v1305 = vadd.f32 %v1037, %v1304
      %v1306 = vpop.f32.mrf.mxu0
      %1307 = vmatprep.mubr.f32.mxu0 0.0
      %1308 = vmatmul.mubr.f32.gmra.mxu0 %v1122
      %v1309 = vpop.f32.mrf.mxu0
      %v1310 = vadd.f32 %v1037, %v1309
      %v1311 = vpop.f32.mrf.mxu0
      %1312 = vmatprep.mubr.f32.mxu0 0.0
      %1313 = vmatmul.mubr.f32.gmra.mxu0 %v1125
      %v1314 = vpop.f32.mrf.mxu0
      %v1315 = vadd.f32 %v1037, %v1314
      %v1316 = vpop.f32.mrf.mxu0
      %1317 = vmatprep.mubr.f32.mxu0 0.0
      %1318 = vmatmul.mubr.f32.gmra.mxu0 %v1128
      %v1319 = vpop.f32.mrf.mxu0
      %v1320 = vadd.f32 %v1037, %v1319
      %v1321 = vpop.f32.mrf.mxu0
      %1322 = vmatprep.mubr.f32.mxu0 0.0
      %1323 = vmatmul.mubr.f32.gmra.mxu0 %v1131
      %v1324 = vpop.f32.mrf.mxu0
      %v1325 = vadd.f32 %v1037, %v1324
      %v1326 = vpop.f32.mrf.mxu0
      %1327 = vdwg.mxu0
      %v1328 = vsel %vm616, %v1200, -1e+30
      %v1329 = vsel %vm617, %v1205, -1e+30
      %v1330 = vsel %vm618, %v1210, -1e+30
      %v1331 = vsel %vm619, %v1215, -1e+30
      %v1332 = vsel %vm620, %v1220, -1e+30
      %v1333 = vsel %vm621, %v1225, -1e+30
      %v1334 = vsel %vm622, %v1230, -1e+30
      %v1335 = vsel %vm623, %v1235, -1e+30
      %v1336 = vsel %vm624, %v1240, -1e+30
      %v1337 = vsel %vm625, %v1245, -1e+30
      %v1338 = vsel %vm626, %v1250, -1e+30
      %v1339 = vsel %vm627, %v1255, -1e+30
      %v1340 = vsel %vm628, %v1260, -1e+30
      %v1341 = vsel %vm629, %v1265, -1e+30
      %v1342 = vsel %vm630, %v1270, -1e+30
      %v1343 = vsel %vm631, %v1275, -1e+30
      %v1344 = vsel %vm632, %v1280, -1e+30
      %v1345 = vsel %vm633, %v1285, -1e+30
      %v1346 = vsel %vm634, %v1290, -1e+30
      %v1347 = vsel %vm635, %v1295, -1e+30
      %v1348 = vsel %vm636, %v1300, -1e+30
      %v1349 = vsel %vm637, %v1305, -1e+30
      %v1350 = vsel %vm638, %v1310, -1e+30
      %v1351 = vsel %vm639, %v1315, -1e+30
      %v1352 = vsel %vm640, %v1320, -1e+30
      %v1353 = vsel %vm641, %v1325, -1e+30
      %v1354 = vld [vmem:[%s276] sm:$0x1]
      %vm1355 = vcmask 7168
      %v1356 = vsel %vm1355, %v1328, -inf
      %v1357 = vsel %vm1355, %v1329, -inf
      %v1358 = vsel %vm1355, %v1330, -inf
      %v1359 = vsel %vm1355, %v1331, -inf
      %v1360 = vsel %vm1355, %v1332, -inf
      %v1361 = vmax.f32 %v1356, %v1360
      %v1362 = vsel %vm1355, %v1333, -inf
      %v1363 = vmax.f32 %v1357, %v1362
      %v1364 = vsel %vm1355, %v1334, -inf
      %v1365 = vmax.f32 %v1358, %v1364
      %v1366 = vsel %vm1355, %v1335, -inf
      %v1367 = vmax.f32 %v1359, %v1366
      %v1368 = vsel %vm1355, %v1336, -inf
      %v1369 = vmax.f32 %v1361, %v1368
      %v1370 = vsel %vm1355, %v1337, -inf
      %v1371 = vmax.f32 %v1363, %v1370
      %v1372 = vsel %vm1355, %v1338, -inf
      %v1373 = vmax.f32 %v1365, %v1372
      %v1374 = vsel %vm1355, %v1339, -inf
      %v1375 = vmax.f32 %v1367, %v1374
      %v1376 = vsel %vm1355, %v1340, -inf
      %v1377 = vmax.f32 %v1369, %v1376
      %v1378 = vsel %vm1355, %v1341, -inf
      %v1379 = vmax.f32 %v1371, %v1378
      %v1380 = vsel %vm1355, %v1342, -inf
      %v1381 = vmax.f32 %v1373, %v1380
      %v1382 = vsel %vm1355, %v1343, -inf
      %v1383 = vmax.f32 %v1375, %v1382
      %v1384 = vsel %vm1355, %v1344, -inf
      %v1385 = vmax.f32 %v1377, %v1384
      %v1386 = vsel %vm1355, %v1345, -inf
      %v1387 = vmax.f32 %v1379, %v1386
      %v1388 = vsel %vm1355, %v1346, -inf
      %v1389 = vmax.f32 %v1381, %v1388
      %v1390 = vsel %vm1355, %v1347, -inf
      %v1391 = vmax.f32 %v1383, %v1390
      %v1392 = vsel %vm1355, %v1348, -inf
      %v1393 = vmax.f32 %v1385, %v1392
      %v1394 = vsel %vm1355, %v1349, -inf
      %v1395 = vmax.f32 %v1387, %v1394
      %v1396 = vsel %vm1355, %v1350, -inf
      %v1397 = vmax.f32 %v1389, %v1396
      %v1398 = vsel %vm1355, %v1351, -inf
      %v1399 = vmax.f32 %v1391, %v1398
      %v1400 = vsel %vm1355, %v1352, -inf
      %v1401 = vmax.f32 %v1393, %v1400
      %v1402 = vsel %vm1355, %v1353, -inf
      %v1403 = vmax.f32 %v1395, %v1402
      %v1404 = vmax.f32 %v1401, %v1403
      %v1405 = vmax.f32 %v1397, %v1399
      %v1406 = vmax.f32 %v1404, %v1405
      %v1407 = vrot.slane %v1406, 4
      %v1408 = vmax.f32 %v1406, %v1407
      %v1409 = vrot.slane %v1408, 2
      %v1410 = vmax.f32 %v1408, %v1409
      %v1411 = vrot.slane %v1410, 1
      %v1412 = vmax.f32 %v1410, %v1411
      %v1413 = vmax.f32 %v1354, %v1412
      %v1414 = vsub.f32 %v1354, %v1413
      %v1415 = vmul.f32 %v1414, 1.442695
      %v1416 = vpow.pop %v1415
      %v1418 = vlaneseq
      %v1419 = vshrl.u32 %v1418, 7
      %v1420 = vsub.s32 0, %v1419
      %v1421 = vrot.slane %v1413, %v1420
      %v1423 = vsub.f32 %v1328, %v1421
      %v1424 = vsub.f32 %v1329, %v1421
      %v1425 = vsub.f32 %v1330, %v1421
      %v1426 = vsub.f32 %v1331, %v1421
      %v1427 = vsub.f32 %v1332, %v1421
      %v1428 = vsub.f32 %v1333, %v1421
      %v1429 = vsub.f32 %v1334, %v1421
      %v1430 = vsub.f32 %v1335, %v1421
      %v1431 = vsub.f32 %v1336, %v1421
      %v1432 = vsub.f32 %v1337, %v1421
      %v1433 = vsub.f32 %v1338, %v1421
      %v1434 = vsub.f32 %v1339, %v1421
      %v1435 = vsub.f32 %v1340, %v1421
      %v1436 = vsub.f32 %v1341, %v1421
      %v1437 = vsub.f32 %v1342, %v1421
      %v1438 = vsub.f32 %v1343, %v1421
      %v1439 = vsub.f32 %v1344, %v1421
      %v1440 = vsub.f32 %v1345, %v1421
      %v1441 = vsub.f32 %v1346, %v1421
      %v1442 = vsub.f32 %v1347, %v1421
      %v1443 = vsub.f32 %v1348, %v1421
      %v1444 = vsub.f32 %v1349, %v1421
      %v1445 = vsub.f32 %v1350, %v1421
      %v1446 = vsub.f32 %v1351, %v1421
      %v1447 = vsub.f32 %v1352, %v1421
      %v1448 = vsub.f32 %v1353, %v1421
      %v1449 = vmul.f32 %v1423, 1.442695
      %v1450 = vpow.pop %v1449
      %v1451 = vmul.f32 %v1424, 1.442695
      %v1452 = vpow.pop %v1451
      %v1453 = vmul.f32 %v1425, 1.442695
      %v1454 = vpow.pop %v1453
      %v1455 = vmul.f32 %v1426, 1.442695
      %v1456 = vpow.pop %v1455
      %v1457 = vmul.f32 %v1427, 1.442695
      %v1458 = vpow.pop %v1457
      %v1459 = vmul.f32 %v1428, 1.442695
      %v1460 = vpow.pop %v1459
      %v1461 = vmul.f32 %v1429, 1.442695
      %v1462 = vpow.pop %v1461
      %v1463 = vmul.f32 %v1430, 1.442695
      %v1464 = vpow.pop %v1463
      %v1465 = vmul.f32 %v1431, 1.442695
      %v1466 = vpow.pop %v1465
      %v1467 = vmul.f32 %v1432, 1.442695
      %v1468 = vpow.pop %v1467
      %v1469 = vmul.f32 %v1433, 1.442695
      %v1470 = vpow.pop %v1469
      %v1471 = vmul.f32 %v1434, 1.442695
      %v1472 = vpow.pop %v1471
      %v1473 = vmul.f32 %v1435, 1.442695
      %v1474 = vpow.pop %v1473
      %v1475 = vmul.f32 %v1436, 1.442695
      %v1476 = vpow.pop %v1475
      %v1477 = vmul.f32 %v1437, 1.442695
      %v1478 = vpow.pop %v1477
      %v1479 = vmul.f32 %v1438, 1.442695
      %v1480 = vpow.pop %v1479
      %v1481 = vmul.f32 %v1439, 1.442695
      %v1482 = vpow.pop %v1481
      %v1483 = vmul.f32 %v1440, 1.442695
      %v1484 = vpow.pop %v1483
      %v1485 = vmul.f32 %v1441, 1.442695
      %v1486 = vpow.pop %v1485
      %v1487 = vmul.f32 %v1442, 1.442695
      %v1488 = vpow.pop %v1487
      %v1489 = vmul.f32 %v1443, 1.442695
      %v1490 = vpow.pop %v1489
      %v1491 = vmul.f32 %v1444, 1.442695
      %v1492 = vpow.pop %v1491
      %v1493 = vmul.f32 %v1445, 1.442695
      %v1494 = vpow.pop %v1493
      %v1495 = vmul.f32 %v1446, 1.442695
      %v1496 = vpow.pop %v1495
      %v1497 = vmul.f32 %v1447, 1.442695
      %v1498 = vpow.pop %v1497
      %v1499 = vmul.f32 %v1448, 1.442695
      %v1500 = vpow.pop %v1499
      %1501 = vxpose.xlu0.b32.start [1/16] %v1450, 128
      %1502 = vxpose.xlu0.b32.cont [2/16] %v1452, 128
      %1503 = vxpose.xlu0.b32.cont [3/16] %v1454, 128
      %1504 = vxpose.xlu0.b32.cont [4/16] %v1456, 128
      %1505 = vxpose.xlu0.b32.cont [5/16] %v1458, 128
      %1506 = vxpose.xlu0.b32.cont [6/16] %v1460, 128
      %1507 = vxpose.xlu0.b32.cont [7/16] %v1462, 128
      %1508 = vxpose.xlu0.b32.cont [8/16] %v1464, 128
      %1509 = vxpose.xlu0.b32.cont [9/16] %v1466, 128
      %1510 = vxpose.xlu0.b32.cont [10/16] %v1468, 128
      %1511 = vxpose.xlu0.b32.cont [11/16] %v1470, 128
      %1512 = vxpose.xlu0.b32.cont [12/16] %v1472, 128
      %1513 = vxpose.xlu0.b32.cont [13/16] %v1474, 128
      %1514 = vxpose.xlu0.b32.cont [14/16] %v1476, 128
      %1515 = vxpose.xlu0.b32.cont [15/16] %v1478, 128
      %1516 = vxpose.xlu0.b32.end [16/16] %v1480, 128
      %v1517 = vpop.trf.xlu0
      %v1518 = vpop.trf.xlu0
      %v1519 = vpop.trf.xlu0
      %v1520 = vpop.trf.xlu0
      %v1521 = vpop.trf.xlu0
      %v1522 = vpop.trf.xlu0
      %v1523 = vpop.trf.xlu0
      %v1524 = vpop.trf.xlu0
      %v1525 = vpop.trf.xlu0
      %v1526 = vpop.trf.xlu0
      %v1527 = vpop.trf.xlu0
      %v1528 = vpop.trf.xlu0
      %v1529 = vpop.trf.xlu0
      %v1530 = vpop.trf.xlu0
      %v1531 = vpop.trf.xlu0
      %v1532 = vpop.trf.xlu0
      %1533 = vxpose.xlu0.b32.start [1/16] %v1482, 128
      %1534 = vxpose.xlu0.b32.cont [2/16] %v1484, 128
      %1535 = vxpose.xlu0.b32.cont [3/16] %v1486, 128
      %1536 = vxpose.xlu0.b32.cont [4/16] %v1488, 128
      %1537 = vxpose.xlu0.b32.cont [5/16] %v1490, 128
      %1538 = vxpose.xlu0.b32.cont [6/16] %v1492, 128
      %1539 = vxpose.xlu0.b32.cont [7/16] %v1494, 128
      %1540 = vxpose.xlu0.b32.cont [8/16] %v1496, 128
      %1541 = vxpose.xlu0.b32.cont [9/16] %v1498, 128
      %1542 = vxpose.xlu0.b32.cont [10/16] %v1500, 128
      %1543 = vxpose.xlu0.b32.cont [11/16] 0.0, 128
      %1544 = vxpose.xlu0.b32.cont [12/16] 0.0, 128
      %1545 = vxpose.xlu0.b32.cont [13/16] 0.0, 128
      %1546 = vxpose.xlu0.b32.cont [14/16] 0.0, 128
      %1547 = vxpose.xlu0.b32.cont [15/16] 0.0, 128
      %1548 = vxpose.xlu0.b32.end [16/16] 0.0, 128
      %v1549 = vpop.trf.xlu0
      %v1550 = vpop.trf.xlu0
      %v1551 = vpop.trf.xlu0
      %v1552 = vpop.trf.xlu0
      %v1553 = vpop.trf.xlu0
      %v1554 = vpop.trf.xlu0
      %v1555 = vpop.trf.xlu0
      %v1556 = vpop.trf.xlu0
      %v1557 = vpop.trf.xlu0
      %v1558 = vpop.trf.xlu0
      %v1559 = vpop.trf.xlu0
      %v1560 = vpop.trf.xlu0
      %v1561 = vpop.trf.xlu0
      %v1562 = vpop.trf.xlu0
      %v1563 = vpop.trf.xlu0
      %v1564 = vpop.trf.xlu0
      %vm1565 = vcmask 654336
      %v1567 = vsel %vm1565, %v1549, 0
      %1569 = vmatprep.subr.mxu0 0.0
      %1570 = vmatpush1.msra.mxu0 %v709
      %1571 = vmatprep.subr.mxu0 0.0
      %1572 = vmatpush1.msra.mxu0 %v708
      %1573 = vmatprep.subr.mxu0 0.0
      %1574 = vmatpush1.msra.mxu0 %v707
      %1575 = vmatprep.subr.mxu0 0.0
      %1576 = vmatpush1.msra.mxu0 %v706
      %1577 = vmatprep.subr.mxu0 0.0
      %1578 = vmatpush1.msra.mxu0 %v705
      %1579 = vmatprep.subr.mxu0 0.0
      %1580 = vmatpush1.msra.mxu0 %v704
      %1581 = vmatprep.subr.mxu0 0.0
      %1582 = vmatpush1.msra.mxu0 %v703
      %1583 = vmatprep.subr.mxu0 0.0
      %1584 = vmatpush1.msra.mxu0 %v702
      %1585 = vmatprep.subr.mxu0 0.0
      %1586 = vmatpush1.msra.mxu0 %v701
      %1587 = vmatprep.subr.mxu0 0.0
      %1588 = vmatpush1.msra.mxu0 %v700
      %1589 = vmatprep.subr.mxu0 0.0
      %1590 = vmatpush1.msra.mxu0 %v699
      %1591 = vmatprep.subr.mxu0 0.0
      %1592 = vmatpush1.msra.mxu0 %v698
      %1593 = vmatprep.subr.mxu0 0.0
      %1594 = vmatpush1.msra.mxu0 %v697
      %1595 = vmatprep.subr.mxu0 0.0
      %1596 = vmatpush1.msra.mxu0 %v696
      %1597 = vmatprep.subr.mxu0 0.0
      %1598 = vmatpush1.msra.mxu0 %v695
      %1599 = vmatprep.subr.mxu0 0.0
      %1600 = vmatpush1.msra.mxu0 %v694
      %1601 = vmatprep.subr.mxu0 0.0
      %1602 = vmatpush2.msra.mxu0 0.0
      %1603 = vmatprep.subr.mxu0 0.0
      %1604 = vmatpush2.msra.mxu0 0.0
      %1605 = vmatprep.subr.mxu0 0.0
      %1606 = vmatpush2.msra.mxu0 0.0
      %1607 = vmatprep.subr.mxu0 0.0
      %1608 = vmatpush2.msra.mxu0 0.0
      %1609 = vmatprep.subr.mxu0 0.0
      %1610 = vmatpush2.msra.mxu0 0.0
      %1611 = vmatprep.subr.mxu0 0.0
      %1612 = vmatpush2.msra.mxu0 0.0
      %1613 = vmatprep.subr.mxu0 0.0
      %1614 = vmatpush2.msra.mxu0 %v719
      %1615 = vmatprep.subr.mxu0 0.0
      %1616 = vmatpush2.msra.mxu0 %v718
      %1617 = vmatprep.subr.mxu0 0.0
      %1618 = vmatpush2.msra.mxu0 %v717
      %1619 = vmatprep.subr.mxu0 0.0
      %1620 = vmatpush2.msra.mxu0 %v716
      %1621 = vmatprep.subr.mxu0 0.0
      %1622 = vmatpush2.msra.mxu0 %v715
      %1623 = vmatprep.subr.mxu0 0.0
      %1624 = vmatpush2.msra.mxu0 %v714
      %1625 = vmatprep.subr.mxu0 0.0
      %1626 = vmatpush2.msra.mxu0 %v713
      %1627 = vmatprep.subr.mxu0 0.0
      %1628 = vmatpush2.msra.mxu0 %v712
      %1629 = vmatprep.subr.mxu0 0.0
      %1630 = vmatpush2.msra.mxu0 %v711
      %1631 = vmatprep.subr.mxu0 0.0
      %1632 = vmatpush2.msra.mxu0 %v710
      %1633 = vmatprep.mubr.f32.mxu0 %v1567
      %1634 = vmatmul.mubr.f32.gmra.mxu0 %v1517
      %v1635 = vpop.f32.mrf.mxu0
      %v1636 = vadd.f32 0.0, %v1635
      %v1637 = vpop.f32.mrf.mxu0
      %1638 = vdwg.mxu0
      %v1639 = vld [vmem:[%s279] sm:$0x1]
      %v1640 = vmul.f32 %v1416, %v1639
      %v1641 = vsel %vm1355, %v1450, 0.0
      %v1642 = vsel %vm1355, %v1452, 0.0
      %v1643 = vadd.f32 %v1641, %v1642
      %v1644 = vsel %vm1355, %v1454, 0.0
      %v1645 = vadd.f32 %v1643, %v1644
      %v1646 = vsel %vm1355, %v1456, 0.0
      %v1647 = vadd.f32 %v1645, %v1646
      %v1648 = vsel %vm1355, %v1458, 0.0
      %v1649 = vadd.f32 %v1647, %v1648
      %v1650 = vsel %vm1355, %v1460, 0.0
      %v1651 = vadd.f32 %v1649, %v1650
      %v1652 = vsel %vm1355, %v1462, 0.0
      %v1653 = vadd.f32 %v1651, %v1652
      %v1654 = vsel %vm1355, %v1464, 0.0
      %v1655 = vadd.f32 %v1653, %v1654
      %v1656 = vsel %vm1355, %v1466, 0.0
      %v1657 = vadd.f32 %v1655, %v1656
      %v1658 = vsel %vm1355, %v1468, 0.0
      %v1659 = vadd.f32 %v1657, %v1658
      %v1660 = vsel %vm1355, %v1470, 0.0
      %v1661 = vadd.f32 %v1659, %v1660
      %v1662 = vsel %vm1355, %v1472, 0.0
      %v1663 = vadd.f32 %v1661, %v1662
      %v1664 = vsel %vm1355, %v1474, 0.0
      %v1665 = vadd.f32 %v1663, %v1664
      %v1666 = vsel %vm1355, %v1476, 0.0
      %v1667 = vadd.f32 %v1665, %v1666
      %v1668 = vsel %vm1355, %v1478, 0.0
      %v1669 = vadd.f32 %v1667, %v1668
      %v1670 = vsel %vm1355, %v1480, 0.0
      %v1671 = vadd.f32 %v1669, %v1670
      %v1672 = vsel %vm1355, %v1482, 0.0
      %v1673 = vadd.f32 %v1671, %v1672
      %v1674 = vsel %vm1355, %v1484, 0.0
      %v1675 = vadd.f32 %v1673, %v1674
      %v1676 = vsel %vm1355, %v1486, 0.0
      %v1677 = vadd.f32 %v1675, %v1676
      %v1678 = vsel %vm1355, %v1488, 0.0
      %v1679 = vadd.f32 %v1677, %v1678
      %v1680 = vsel %vm1355, %v1490, 0.0
      %v1681 = vadd.f32 %v1679, %v1680
      %v1682 = vsel %vm1355, %v1492, 0.0
      %v1683 = vadd.f32 %v1681, %v1682
      %v1684 = vsel %vm1355, %v1494, 0.0
      %v1685 = vadd.f32 %v1683, %v1684
      %v1686 = vsel %vm1355, %v1496, 0.0
      %v1687 = vadd.f32 %v1685, %v1686
      %v1688 = vsel %vm1355, %v1498, 0.0
      %v1689 = vadd.f32 %v1687, %v1688
      %v1690 = vsel %vm1355, %v1500, 0.0
      %v1691 = vadd.f32 %v1689, %v1690
      %v1692 = vrot.slane %v1691, 4
      %v1693 = vadd.f32 %v1691, %v1692
      %v1694 = vrot.slane %v1693, 2
      %v1695 = vadd.f32 %v1693, %v1694
      %v1696 = vrot.slane %v1695, 1
      %v1697 = vadd.f32 %v1695, %v1696
      %v1698 = vadd.f32 %v1640, %v1697
      %vm1699 = vcmask 0
      %1700 = vst.msk [vmem:[%s279] sm:$0x1] %vm1699, %v1698
      %v1701 = vld [vmem:[%s282] sm:$0x1]
      %1703 = vset.pattern.permute.xlu0 0
      %1704 = vperm.xlu0 %1703, %v1416
      %v1705 = vpop.permute.xlu0 %1704
      %v1707 = vlaneseq
      %v1708 = vshrl.u32 %v1707, 7
      %v1709 = vsub.s32 0, %v1708
      %v1710 = vrot.slane %v1705, %v1709
      %v1711 = vmul.f32 %v1710, %v1701
      %v1712 = vadd.f32 %v1711, %v1636
      %vm1713 = vcmask 516096
      %1714 = vst.msk [vmem:[%s282] sm:$0x1] %vm1713, %v1712
      %1715 = vst.msk [vmem:[%s276] sm:$0x1] %vm1699, %v1413
      %p1716 = scmp.lt.s32.totalorder %s21, 1
      %s1717 = scalar_select %p1716, %s21, 1
      %s1718 = scalar_lea.vmem %s3, %s1717
      %p1719 = scmp.lt.s32.totalorder %s21, 1
      %s1720 = scalar_select %p1719, %s21, 1
      %s1721 = scalar_lea.vmem %s4, %s1720
      %p1722 = scmp.lt.s32.totalorder %s21, 1
      %s1723 = scalar_select %p1722, %s21, 1
      %s1724 = scalar_lea.vmem %s5, %s1723
      // Predicated region
      $region37: #{deep_attn_mil_forward.1} parent=31 // pred_check
        %p1725 = pneg %p121
      $region38: #{deep_attn_mil_forward.1} parent=31 // pred_check_branch
        %1727 = sbr.rel (%p1725) target = $region40
      $region39: #{deep_attn_mil_forward.1} parent=31 // pred_region
        _
      $region40: #{deep_attn_mil_forward.1} parent=31 // pred_fallthru
        _
      // Predicated region
      $region41: #{deep_attn_mil_forward.1} parent=31 // pred_check
        %p1728 = pneg %p147
      $region42: #{deep_attn_mil_forward.1} parent=31 // pred_check_branch
        %1730 = sbr.rel (%p1728) target = $region44
      $region43: #{deep_attn_mil_forward.1} parent=31 // pred_region
        _
      $region44: #{deep_attn_mil_forward.1} parent=31 // pred_fallthru
        _
      // Predicated region
      $region45: #{deep_attn_mil_forward.1} parent=31 // pred_check
        %p1731 = pneg %p173
      $region46: #{deep_attn_mil_forward.1} parent=31 // pred_check_branch
        %1733 = sbr.rel (%p1731) target = $region48
      $region47: #{deep_attn_mil_forward.1} parent=31 // pred_region
        _
      $region48: #{deep_attn_mil_forward.1} parent=31 // pred_fallthru
        _
    $region32: #{deep_attn_mil_forward.1} parent=5 // pred_fallthru
      _
    %p1734 = scmp.le.s32.totalorder 2, %s12
    // Predicated region
    $region49: #{deep_attn_mil_forward.1} parent=5 // pred_check
      %p1735 = pneg %p1734
    $region50: #{deep_attn_mil_forward.1} parent=5 // pred_check_branch
      %1737 = sbr.rel (%p1735) target = $region52
    $region51: #{deep_attn_mil_forward.1} parent=5 // pred_region
      %s1738 = ssub.s32 %s12, 2
      // Predicated region
      $region53: #{deep_attn_mil_forward.1} parent=51 // pred_check
        %p1739 = pneg %p127
      $region54: #{deep_attn_mil_forward.1} parent=51 // pred_check_branch
        %1741 = sbr.rel (%p1739) target = $region56
      $region55: #{deep_attn_mil_forward.1} parent=51 // pred_region
        %p1742 = scmp.lt.s32.totalorder %s23, 1
        %s1743 = scalar_select %p1742, %s23, 1
        %s1744 = scalar_lea.vmem %s3, %s1743
      $region56: #{deep_attn_mil_forward.1} parent=51 // pred_fallthru
        _
      // Predicated region
      $region57: #{deep_attn_mil_forward.1} parent=51 // pred_check
        %p1745 = pneg %p153
      $region58: #{deep_attn_mil_forward.1} parent=51 // pred_check_branch
        %1747 = sbr.rel (%p1745) target = $region60
      $region59: #{deep_attn_mil_forward.1} parent=51 // pred_region
        %p1748 = scmp.lt.s32.totalorder %s23, 1
        %s1749 = scalar_select %p1748, %s23, 1
        %s1750 = scalar_lea.vmem %s4, %s1749
      $region60: #{deep_attn_mil_forward.1} parent=51 // pred_fallthru
        _
      // Predicated region
      $region61: #{deep_attn_mil_forward.1} parent=51 // pred_check
        %p1751 = pneg %p179
      $region62: #{deep_attn_mil_forward.1} parent=51 // pred_check_branch
        %1753 = sbr.rel (%p1751) target = $region64
      $region63: #{deep_attn_mil_forward.1} parent=51 // pred_region
        %p1754 = scmp.lt.s32.totalorder %s23, 1
        %s1755 = scalar_select %p1754, %s23, 1
        %s1756 = scalar_lea.vmem %s5, %s1755
      $region64: #{deep_attn_mil_forward.1} parent=51 // pred_fallthru
        _
    $region52: #{deep_attn_mil_forward.1} parent=5 // pred_fallthru
      _
  $region6: #{deep_attn_mil_forward.1} parent=0 // loop_footer
    %s16 = sadd.s32 1, %s12
  $region7: #{deep_attn_mil_forward.1} parent=0 // loop_footer_branch
    %11 = sbr.rel target = $region3
  $region8: #{deep_attn_mil_forward.1} parent=0 // loop_exit
    _

</llo_original>
